<compile_context>
chip_gen: v5e
topology: v5e:2x2
jax: 0.10.0
libtpu: 0.0.40
codegen_flags: <defaults>
</compile_context>

<pallas_src>
import functools

import jax
import jax.numpy as jnp
from jax.experimental import pallas as pl
from jax.experimental.pallas import tpu as pltpu

EPS = 1e-5

# Largest lane-tile one grid step owns.  Sized so 2 buffers x (9*Cin*TILE_M bf16
# taps + C_out*TILE_M f32 y) stays well under v7x's 64 MiB physical VMEM for
# realistic Cin; v5e/v6e (128 MiB) can raise this to 2048.
TILE_M_MAX = 1024
VMEM_LIMIT_BYTES = 48 * 1024 * 1024


def _pick_tile_m(m, cap):
    """Largest tile that is a multiple of 128 lanes, divides M and is <= cap.
    Falls back to a single whole-M block when M isn't lane-aligned."""
    if m % 128 != 0 or m <= cap:
        return m
    best = 128
    t = 256
    while t <= cap:
        if m % t == 0:
            best = t
        t += 128
    return best


# ----------------------------- Pallas kernels --------------------------------
def _matmul_stats_kernel(taps_ref, w_ref, y_ref, sum_ref, sumsq_ref):
    """Pass 1: y = W @ taps for one M-tile + per-channel sum / sum-of-squares.

    taps_ref : (K, TILE_M)     bf16  K = 9*C_in (all im2col taps on the contraction axis)
    w_ref    : (C_out, K)      f32   fused conv weights (constant index_map, VMEM-resident)
    y_ref    : (C_out, TILE_M) f32   pre-BN conv output tile (lane-dense, unmasked stores)
    sum_ref  : (C_out, 1)      f32   running per-channel sum      (accumulator output)
    sumsq_ref: (C_out, 1)      f32   running per-channel sum(y^2) (accumulator output)
    """
    @pl.when(pl.program_id(0) == 0)
    def _():
        sum_ref[...] = jnp.zeros_like(sum_ref)
        sumsq_ref[...] = jnp.zeros_like(sumsq_ref)

    # Upcast bf16 taps in VMEM and contract in f32 on the MXU.  (A bf16 x bf16
    # dot is faster on hardware but unsupported by the CPU/interpret executor.)
    y = jnp.dot(w_ref[...], taps_ref[...].astype(jnp.float32),
                preferred_element_type=jnp.float32)
    y_ref[...] = y.astype(y_ref.dtype)

    # Raw sums only; the single 1/M multiply and rsqrt happen once in the wrapper.
    sum_ref[...] += jnp.sum(y, axis=1, keepdims=True)
    sumsq_ref[...] += jnp.sum(y * y, axis=1, keepdims=True)


def _bn_swish_kernel(y_ref, scale_ref, shift_ref, o_ref):
    """Pass 2: z = y*scale + shift ; out = z * sigmoid(z), per M-tile."""
    z = y_ref[...].astype(jnp.float32) * scale_ref[...] + shift_ref[...]
    o_ref[...] = (z * jax.nn.sigmoid(z)).astype(o_ref.dtype)


def _run_stage(taps, w_t, gamma, beta, out_dtype, tile_m_max):
    """One fused stage: conv (single K=9*Cin matmul) + BatchNorm(batch stats) + Swish.

    taps:  (K, M) bf16, M = spatial*batch on the 128-lane axis.
    w_t:   (C_out, K) f32.
    Returns (C_out, M) in `out_dtype`.
    """
    c_out, k = w_t.shape
    m = taps.shape[1]
    tile_m = _pick_tile_m(m, tile_m_max)
    n_tiles = m // tile_m

    y, ysum, ysumsq = pl.pallas_call(
        _matmul_stats_kernel,
        grid=(n_tiles,),
        out_shape=(jax.ShapeDtypeStruct((c_out, m), jnp.float32),
                   jax.ShapeDtypeStruct((c_out, 1), jnp.float32),
                   jax.ShapeDtypeStruct((c_out, 1), jnp.float32)),
        in_specs=[pl.BlockSpec((k, tile_m), lambda i: (0, i)),
                  pl.BlockSpec((c_out, k), lambda i: (0, 0))],
        out_specs=(pl.BlockSpec((c_out, tile_m), lambda i: (0, i)),
                   pl.BlockSpec((c_out, 1), lambda i: (0, 0)),
                   pl.BlockSpec((c_out, 1), lambda i: (0, 0))),
        compiler_params=pltpu.CompilerParams(
            dimension_semantics=("arbitrary",),   # stats accumulate across M tiles
            vmem_limit_bytes=VMEM_LIMIT_BYTES),
    )(taps, w_t)

    # Fold batch statistics into a per-channel affine (tiny (C,1) math in XLA).
    inv_m = 1.0 / float(m)
    mean = ysum * inv_m
    var = jnp.maximum(ysumsq * inv_m - mean * mean, 0.0)   # guard vs. cancellation
    scale = gamma * jax.lax.rsqrt(var + EPS)
    shift = beta - mean * scale

    out = pl.pallas_call(
        _bn_swish_kernel,
        grid=(n_tiles,),
        out_shape=jax.ShapeDtypeStruct((c_out, m), out_dtype),
        in_specs=[pl.BlockSpec((c_out, tile_m), lambda i: (0, i)),
                  pl.BlockSpec((c_out, 1), lambda i: (0, 0)),
                  pl.BlockSpec((c_out, 1), lambda i: (0, 0))],
        out_specs=pl.BlockSpec((c_out, tile_m), lambda i: (0, i)),
        compiler_params=pltpu.CompilerParams(
            dimension_semantics=("parallel",),    # independent tiles -> megacore shard
            vmem_limit_bytes=VMEM_LIMIT_BYTES),
    )(y, scale, shift)
    return out


# ------------------------------- parameters ----------------------------------
def make_conv_block_params(key, in_channel, out_channel):
    cmid = out_channel // 2
    ks = jax.random.split(key, 10)
    n = jax.random.normal
    return {
        "w1": 0.2 * n(ks[0], (9, in_channel, out_channel), jnp.float32),
        "b1": 0.1 * n(ks[1], (1, out_channel), jnp.float32),
        "w2": 0.2 * n(ks[2], (out_channel, cmid), jnp.float32),
        "b2": 0.1 * n(ks[3], (1, cmid), jnp.float32),
        "g1": 1.0 + 0.1 * n(ks[4], (1, cmid), jnp.float32),
        "be1": 0.1 * n(ks[5], (1, cmid), jnp.float32),
        "w3": 0.2 * n(ks[6], (9, cmid, out_channel), jnp.float32),
        "b3": 0.1 * n(ks[7], (1, out_channel), jnp.float32),
        "g2": 1.0 + 0.1 * n(ks[8], (1, out_channel), jnp.float32),
        "be2": 0.1 * n(ks[9], (1, out_channel), jnp.float32),
    }


def make_encoder_params(key, channels):
    keys = jax.random.split(key, len(channels) - 1)
    return [make_conv_block_params(keys[i], channels[i], channels[i + 1])
            for i in range(len(channels) - 1)]


# ------------------------------- forward pass --------------------------------
def conv_block_forward(x_nchw, p, *, tile_m_max=TILE_M_MAX):
    """ConvBlock forward.  x_nchw: (N, Cin, H, W) -> (N, Cout, ceil(H/2), ceil(W/2))."""
    n, cin, h, w = x_nchw.shape
    cout = p["w1"].shape[2]
    cmid = p["w2"].shape[1]
    h2 = (h + 1) // 2
    w2s = (w + 1) // 2
    m = n * h * w
    m2 = n * h2 * w2s

    # Fold the 1x1 conv into the 3x3 taps offline: w1f[t] = w1[t] @ w2.
    w1f = jnp.einsum("tic,cd->tid", p["w1"], p["w2"])              # (9, Cin, Cmid)
    w1f_t = jnp.transpose(w1f.reshape(9 * cin, cmid))              # (Cmid, 9*Cin)
    w3_t = jnp.transpose(p["w3"].reshape(9 * cmid, cout))          # (Cout, 9*Cmid)
    # Conv biases b1/b2/b3 are dropped: every conv is immediately followed by a
    # batch-statistics BatchNorm, which cancels per-channel constants exactly.
    # (Only valid in training-mode BN; eval/running-stats BN would need them.)
    g1, be1 = p["g1"].reshape(cmid, 1), p["be1"].reshape(cmid, 1)
    g2, be2 = p["g2"].reshape(cout, 1), p["be2"].reshape(cout, 1)

    # ---- stage-1 im2col taps, built directly from NCHW in bf16 ----
    xpad = jnp.pad(x_nchw.astype(jnp.bfloat16), ((0, 0), (0, 0), (1, 1), (1, 1)))
    taps1 = jnp.stack([xpad[:, :, dy:dy + h, dx:dx + w]
                       for dy in range(3) for dx in range(3)], axis=0)   # (9,N,Cin,H,W)
    taps1 = jnp.transpose(taps1, (0, 2, 1, 3, 4)).reshape(9 * cin, m)    # (9*Cin, M)
    # TODO(synk): build taps in-kernel from a halo'd VMEM block (manual DMA) to
    #             remove the 9x-activation HBM im2col traffic.

    # conv3x3(pad1) [1x1 folded in] + BN + Swish  ->  z: (Cmid, M) bf16
    z = _run_stage(taps1, w1f_t, g1, be1, jnp.bfloat16, tile_m_max)

    # ---- stage-2 taps: stride-2, pad-1 windows of z, (9*Cmid, M2) bf16 ----
    zpad = jnp.pad(z.reshape(cmid, n, h, w), ((0, 0), (0, 0), (1, 1), (1, 1)))
    taps2 = jnp.stack([zpad[:, :, dy:dy + 2 * h2:2, dx:dx + 2 * w2s:2]
                       for dy in range(3) for dx in range(3)], axis=0)   # (9,Cmid,N,H2,W2)
    taps2 = taps2.reshape(9 * cmid, m2)
    # TODO(synk): fuse stage-1 normalize+Swish and the stride-2 gather into the
    #             stage-2 pass to drop the (Cmid, M) HBM round trip.

    # conv3x3(stride2, pad1) + BN + Swish  ->  (Cout, M2) f32
    out = _run_stage(taps2, w3_t, g2, be2, jnp.float32, tile_m_max)

    # TODO(synk): emit NCHW directly from pass-2 out_specs to drop this transpose.
    return jnp.transpose(out.reshape(cout, n, h2, w2s), (1, 0, 2, 3))


def encoder_block_forward(x_nchw, params_list, *, tile_m_max=TILE_M_MAX):
    """EncoderBlock forward: chain of ConvBlocks."""
    for p in params_list:
        x_nchw = conv_block_forward(x_nchw, p, tile_m_max=tile_m_max)
    return x_nchw


# ---------------- pure-JAX f32 reference (numerical sanity check) ------------
def _ref_conv_block(x_nchw, p):
    def conv3x3(x, w_tap, b, stride):
        ci, co = w_tap.shape[1], w_tap.shape[2]
        wk = jnp.transpose(w_tap.reshape(3, 3, ci, co), (3, 2, 0, 1))   # OIHW
        y = jax.lax.conv_general_dilated(
            x, wk, (stride, stride), ((1, 1), (1, 1)),
            dimension_numbers=("NCHW", "OIHW", "NCHW"))
        return y + b.reshape(1, co, 1, 1)

    def bn_swish(x, g, be):
        mean = jnp.mean(x, axis=(0, 2, 3), keepdims=True)
        var = jnp.mean((x - mean) ** 2, axis=(0, 2, 3), keepdims=True)
        z = (x - mean) * jax.lax.rsqrt(var + EPS) * g.reshape(1, -1, 1, 1) \
            + be.reshape(1, -1, 1, 1)
        return z * jax.nn.sigmoid(z)

    y = conv3x3(x_nchw, p["w1"], p["b1"], 1)
    y = jnp.einsum("nchw,cd->ndhw", y, p["w2"]) + p["b2"].reshape(1, -1, 1, 1)
    y = bn_swish(y, p["g1"], p["be1"])
    y = conv3x3(y, p["w3"], p["b3"], 2)
    return bn_swish(y, p["g2"], p["be2"])


def _ref_encoder(x_nchw, params_list):
    for p in params_list:
        x_nchw = _ref_conv_block(x_nchw, p)
    return x_nchw


if __name__ == "__main__":
    # EncoderBlock(channels=[4, 8, 16]): two ConvBlocks, batch=2, spatial 16x16.
    CHANNELS = (4, 8, 16)
    N, H, W = 2, 16, 16

    key = jax.random.PRNGKey(0)
    k_x, k_p = jax.random.split(key)
    x = jax.random.normal(k_x, (N, CHANNELS[0], H, W), jnp.float32)
    params = make_encoder_params(k_p, CHANNELS)

    # tile_m_max=128 so this small test exercises the multi-tile grid and the
    # cross-tile BatchNorm accumulation; production default is TILE_M_MAX.
    fwd = jax.jit(functools.partial(encoder_block_forward, tile_m_max=128))
    out = jax.block_until_ready(fwd(x, params))

    assert out.shape == (N, CHANNELS[-1], H // 4, W // 4), out.shape

    ref = jax.block_until_ready(_ref_encoder(x, params))
    max_err = float(jnp.max(jnp.abs(out - ref)))
    # Tolerance accounts for bf16 taps/intermediates whose rounding is amplified
    # by BN rescaling across two chained ConvBlocks; structural errors are O(1).
    assert jnp.allclose(out, ref, atol=1e-1, rtol=5e-2), max_err

    print("KERNEL_OK")
</pallas_src>

<mosaic_0001>
module attributes {stable_mosaic.version = 11 : i64} {
  func.func @_matmul_stats_kernel(%arg0: i32, %arg1: memref<36x128xbf16, #tpu.memory_space<vmem>>, %arg2: memref<4x36xf32, #tpu.memory_space<vmem>>, %arg3: memref<4x128xf32, #tpu.memory_space<vmem>>, %arg4: memref<4x1xf32, #tpu.memory_space<vmem>>, %arg5: memref<4x1xf32, #tpu.memory_space<vmem>>) attributes {dimension_semantics = [#tpu.dimension_semantics<arbitrary>], iteration_bounds = array<i64: 4>, scalar_prefetch = 0 : i64, scratch_operands = 0 : i64, tpu.core_type = #tpu.core_type<tc>, window_params = [{transform_indices = @transform_0, window_bounds = array<i64: 36, 128>}, {pipeline_mode = #tpu.pipeline_mode<synchronous>, transform_indices = @transform_1, window_bounds = array<i64: 4, 36>}, {transform_indices = @transform_2, window_bounds = array<i64: 4, 128>}, {pipeline_mode = #tpu.pipeline_mode<synchronous>, transform_indices = @transform_3, window_bounds = array<i64: 4, 1>}, {pipeline_mode = #tpu.pipeline_mode<synchronous>, transform_indices = @transform_4, window_bounds = array<i64: 4, 1>}]} {
    %c0_i32 = arith.constant 0 : i32
    %0 = arith.cmpi eq, %arg0, %c0_i32 : i32
    %1 = arith.extui %0 : i1 to i32
    %c0_i32_0 = arith.constant 0 : i32
    %2 = arith.cmpi ne, %1, %c0_i32_0 : i32
    scf.if %2 {
      %cst_16 = arith.constant 0.000000e+00 : f32
      %19 = vector.broadcast %cst_16 : f32 to vector<4x1xf32>
      %c0_17 = arith.constant 0 : index
      %c0_18 = arith.constant 0 : index
      %20 = vector.load %arg4[%c0_17, %c0_18] : memref<4x1xf32, #tpu.memory_space<vmem>>, vector<4x1xf32>
      tpu.vector_store %arg4[%c0_17, %c0_18], %19 {strides = array<i32>} : memref<4x1xf32, #tpu.memory_space<vmem>>, vector<4x1xf32>,
      %cst_19 = arith.constant 0.000000e+00 : f32
      %21 = vector.broadcast %cst_19 : f32 to vector<4x1xf32>
      %c0_20 = arith.constant 0 : index
      %c0_21 = arith.constant 0 : index
      %22 = vector.load %arg5[%c0_20, %c0_21] : memref<4x1xf32, #tpu.memory_space<vmem>>, vector<4x1xf32>
      tpu.vector_store %arg5[%c0_20, %c0_21], %21 {strides = array<i32>} : memref<4x1xf32, #tpu.memory_space<vmem>>, vector<4x1xf32>,
    } else {
    }
    %c0 = arith.constant 0 : index
    %c0_1 = arith.constant 0 : index
    %3 = vector.load %arg2[%c0, %c0_1] : memref<4x36xf32, #tpu.memory_space<vmem>>, vector<4x36xf32>
    %c0_2 = arith.constant 0 : index
    %c0_3 = arith.constant 0 : index
    %4 = vector.load %arg1[%c0_2, %c0_3] : memref<36x128xbf16, #tpu.memory_space<vmem>>, vector<36x128xbf16>
    %5 = arith.extf %4 : vector<36x128xbf16> to vector<36x128xf32>
    %cst = arith.constant dense<0.000000e+00> : vector<4x128xf32>
    %6 = tpu.matmul %3, %5, %cst {dimension_numbers = #tpu.dot_dimension_numbers<[1], [0], [0], [1], [0, 0, 1, 1], [], []>} : vector<4x36xf32>, vector<36x128xf32>, vector<4x128xf32> -> vector<4x128xf32>
    %c0_4 = arith.constant 0 : index
    %c0_5 = arith.constant 0 : index
    %7 = vector.load %arg3[%c0_4, %c0_5] : memref<4x128xf32, #tpu.memory_space<vmem>>, vector<4x128xf32>
    tpu.vector_store %arg3[%c0_4, %c0_5], %6 {strides = array<i32>} : memref<4x128xf32, #tpu.memory_space<vmem>>, vector<4x128xf32>,
    %c0_6 = arith.constant 0 : index
    %c0_7 = arith.constant 0 : index
    %8 = vector.load %arg4[%c0_6, %c0_7] : memref<4x1xf32, #tpu.memory_space<vmem>>, vector<4x1xf32>
    %cst_8 = arith.constant dense<0.000000e+00> : vector<4xf32>
    %9 = vector.multi_reduction <add>, %6, %cst_8 [1] : vector<4x128xf32> to vector<4xf32>
    %10 = vector.shape_cast %9 : vector<4xf32> to vector<4x1xf32>
    %11 = arith.addf %8, %10 : vector<4x1xf32>
    %c0_9 = arith.constant 0 : index
    %c0_10 = arith.constant 0 : index
    %12 = vector.load %arg4[%c0_9, %c0_10] : memref<4x1xf32, #tpu.memory_space<vmem>>, vector<4x1xf32>
    tpu.vector_store %arg4[%c0_9, %c0_10], %11 {strides = array<i32>} : memref<4x1xf32, #tpu.memory_space<vmem>>, vector<4x1xf32>,
    %c0_11 = arith.constant 0 : index
    %c0_12 = arith.constant 0 : index
    %13 = vector.load %arg5[%c0_11, %c0_12] : memref<4x1xf32, #tpu.memory_space<vmem>>, vector<4x1xf32>
    %14 = arith.mulf %6, %6 : vector<4x128xf32>
    %cst_13 = arith.constant dense<0.000000e+00> : vector<4xf32>
    %15 = vector.multi_reduction <add>, %14, %cst_13 [1] : vector<4x128xf32> to vector<4xf32>
    %16 = vector.shape_cast %15 : vector<4xf32> to vector<4x1xf32>
    %17 = arith.addf %13, %16 : vector<4x1xf32>
    %c0_14 = arith.constant 0 : index
    %c0_15 = arith.constant 0 : index
    %18 = vector.load %arg5[%c0_14, %c0_15] : memref<4x1xf32, #tpu.memory_space<vmem>>, vector<4x1xf32>
    tpu.vector_store %arg5[%c0_14, %c0_15], %17 {strides = array<i32>} : memref<4x1xf32, #tpu.memory_space<vmem>>, vector<4x1xf32>,
    return
  }
  func.func @transform_0(%arg0: i32) -> (i32, i32) {
    %c0_i32 = arith.constant 0 : i32
    %c0_i32_0 = arith.constant 0 : i32
    return %c0_i32, %arg0 : i32, i32
  }
  func.func @transform_1(%arg0: i32) -> (i32, i32) {
    %c0_i32 = arith.constant 0 : i32
    %c0_i32_0 = arith.constant 0 : i32
    %c0_i32_1 = arith.constant 0 : i32
    return %c0_i32, %c0_i32_0 : i32, i32
  }
  func.func @transform_2(%arg0: i32) -> (i32, i32) {
    %c0_i32 = arith.constant 0 : i32
    %c0_i32_0 = arith.constant 0 : i32
    return %c0_i32, %arg0 : i32, i32
  }
  func.func @transform_3(%arg0: i32) -> (i32, i32) {
    %c0_i32 = arith.constant 0 : i32
    %c0_i32_0 = arith.constant 0 : i32
    %c0_i32_1 = arith.constant 0 : i32
    return %c0_i32, %c0_i32_0 : i32, i32
  }
  func.func @transform_4(%arg0: i32) -> (i32, i32) {
    %c0_i32 = arith.constant 0 : i32
    %c0_i32_0 = arith.constant 0 : i32
    %c0_i32_1 = arith.constant 0 : i32
    return %c0_i32, %c0_i32_0 : i32, i32
  }
}

module attributes {stable_mosaic.version = 11 : i64} {
  func.func @_bn_swish_kernel(%arg0: i32, %arg1: memref<4x128xf32, #tpu.memory_space<vmem>>, %arg2: memref<4x1xf32, #tpu.memory_space<vmem>>, %arg3: memref<4x1xf32, #tpu.memory_space<vmem>>, %arg4: memref<4x128xbf16, #tpu.memory_space<vmem>>) attributes {dimension_semantics = [#tpu.dimension_semantics<parallel>], iteration_bounds = array<i64: 4>, scalar_prefetch = 0 : i64, scratch_operands = 0 : i64, tpu.core_type = #tpu.core_type<tc>, window_params = [{transform_indices = @transform_0, window_bounds = array<i64: 4, 128>}, {pipeline_mode = #tpu.pipeline_mode<synchronous>, transform_indices = @transform_1, window_bounds = array<i64: 4, 1>}, {pipeline_mode = #tpu.pipeline_mode<synchronous>, transform_indices = @transform_2, window_bounds = array<i64: 4, 1>}, {transform_indices = @transform_3, window_bounds = array<i64: 4, 128>}]} {
    %c0 = arith.constant 0 : index
    %c0_0 = arith.constant 0 : index
    %0 = vector.load %arg1[%c0, %c0_0] : memref<4x128xf32, #tpu.memory_space<vmem>>, vector<4x128xf32>
    %c0_1 = arith.constant 0 : index
    %c0_2 = arith.constant 0 : index
    %1 = vector.load %arg2[%c0_1, %c0_2] : memref<4x1xf32, #tpu.memory_space<vmem>>, vector<4x1xf32>
    %2 = vector.broadcast %1 : vector<4x1xf32> to vector<4x128xf32>
    %3 = arith.mulf %0, %2 : vector<4x128xf32>
    %c0_3 = arith.constant 0 : index
    %c0_4 = arith.constant 0 : index
    %4 = vector.load %arg3[%c0_3, %c0_4] : memref<4x1xf32, #tpu.memory_space<vmem>>, vector<4x1xf32>
    %5 = vector.broadcast %4 : vector<4x1xf32> to vector<4x128xf32>
    %6 = arith.addf %3, %5 : vector<4x128xf32>
    %7 = arith.negf %6 : vector<4x128xf32>
    %8 = math.exp %7 : vector<4x128xf32>
    %cst = arith.constant 1.000000e+00 : f32
    %9 = vector.broadcast %cst : f32 to vector<4x128xf32>
    %10 = arith.addf %9, %8 : vector<4x128xf32>
    %11 = arith.divf %9, %10 : vector<4x128xf32>
    %12 = arith.mulf %6, %11 : vector<4x128xf32>
    %13 = arith.truncf %12 : vector<4x128xf32> to vector<4x128xbf16>
    %c0_5 = arith.constant 0 : index
    %c0_6 = arith.constant 0 : index
    %14 = vector.load %arg4[%c0_5, %c0_6] : memref<4x128xbf16, #tpu.memory_space<vmem>>, vector<4x128xbf16>
    tpu.vector_store %arg4[%c0_5, %c0_6], %13 {strides = array<i32>} : memref<4x128xbf16, #tpu.memory_space<vmem>>, vector<4x128xbf16>,
    return
  }
  func.func @transform_0(%arg0: i32) -> (i32, i32) {
    %c0_i32 = arith.constant 0 : i32
    %c0_i32_0 = arith.constant 0 : i32
    return %c0_i32, %arg0 : i32, i32
  }
  func.func @transform_1(%arg0: i32) -> (i32, i32) {
    %c0_i32 = arith.constant 0 : i32
    %c0_i32_0 = arith.constant 0 : i32
    %c0_i32_1 = arith.constant 0 : i32
    return %c0_i32, %c0_i32_0 : i32, i32
  }
  func.func @transform_2(%arg0: i32) -> (i32, i32) {
    %c0_i32 = arith.constant 0 : i32
    %c0_i32_0 = arith.constant 0 : i32
    %c0_i32_1 = arith.constant 0 : i32
    return %c0_i32, %c0_i32_0 : i32, i32
  }
  func.func @transform_3(%arg0: i32) -> (i32, i32) {
    %c0_i32 = arith.constant 0 : i32
    %c0_i32_0 = arith.constant 0 : i32
    return %c0_i32, %arg0 : i32, i32
  }
}

module attributes {stable_mosaic.version = 11 : i64} {
  func.func @_bn_swish_kernel(%arg0: i32, %arg1: memref<8x128xf32, #tpu.memory_space<vmem>>, %arg2: memref<8x1xf32, #tpu.memory_space<vmem>>, %arg3: memref<8x1xf32, #tpu.memory_space<vmem>>, %arg4: memref<8x128xf32, #tpu.memory_space<vmem>>) attributes {dimension_semantics = [#tpu.dimension_semantics<parallel>], iteration_bounds = array<i64: 1>, scalar_prefetch = 0 : i64, scratch_operands = 0 : i64, tpu.core_type = #tpu.core_type<tc>, window_params = [{transform_indices = @transform_0, window_bounds = array<i64: 8, 128>}, {pipeline_mode = #tpu.pipeline_mode<synchronous>, transform_indices = @transform_1, window_bounds = array<i64: 8, 1>}, {pipeline_mode = #tpu.pipeline_mode<synchronous>, transform_indices = @transform_2, window_bounds = array<i64: 8, 1>}, {transform_indices = @transform_3, window_bounds = array<i64: 8, 128>}]} {
    %c0 = arith.constant 0 : index
    %c0_0 = arith.constant 0 : index
    %0 = vector.load %arg1[%c0, %c0_0] : memref<8x128xf32, #tpu.memory_space<vmem>>, vector<8x128xf32>
    %c0_1 = arith.constant 0 : index
    %c0_2 = arith.constant 0 : index
    %1 = vector.load %arg2[%c0_1, %c0_2] : memref<8x1xf32, #tpu.memory_space<vmem>>, vector<8x1xf32>
    %2 = vector.broadcast %1 : vector<8x1xf32> to vector<8x128xf32>
    %3 = arith.mulf %0, %2 : vector<8x128xf32>
    %c0_3 = arith.constant 0 : index
    %c0_4 = arith.constant 0 : index
    %4 = vector.load %arg3[%c0_3, %c0_4] : memref<8x1xf32, #tpu.memory_space<vmem>>, vector<8x1xf32>
    %5 = vector.broadcast %4 : vector<8x1xf32> to vector<8x128xf32>
    %6 = arith.addf %3, %5 : vector<8x128xf32>
    %7 = arith.negf %6 : vector<8x128xf32>
    %8 = math.exp %7 : vector<8x128xf32>
    %cst = arith.constant 1.000000e+00 : f32
    %9 = vector.broadcast %cst : f32 to vector<8x128xf32>
    %10 = arith.addf %9, %8 : vector<8x128xf32>
    %11 = arith.divf %9, %10 : vector<8x128xf32>
    %12 = arith.mulf %6, %11 : vector<8x128xf32>
    %c0_5 = arith.constant 0 : index
    %c0_6 = arith.constant 0 : index
    %13 = vector.load %arg4[%c0_5, %c0_6] : memref<8x128xf32, #tpu.memory_space<vmem>>, vector<8x128xf32>
    tpu.vector_store %arg4[%c0_5, %c0_6], %12 {strides = array<i32>} : memref<8x128xf32, #tpu.memory_space<vmem>>, vector<8x128xf32>,
    return
  }
  func.func @transform_0(%arg0: i32) -> (i32, i32) {
    %c0_i32 = arith.constant 0 : i32
    %c0_i32_0 = arith.constant 0 : i32
    return %c0_i32, %arg0 : i32, i32
  }
  func.func @transform_1(%arg0: i32) -> (i32, i32) {
    %c0_i32 = arith.constant 0 : i32
    %c0_i32_0 = arith.constant 0 : i32
    %c0_i32_1 = arith.constant 0 : i32
    return %c0_i32, %c0_i32_0 : i32, i32
  }
  func.func @transform_2(%arg0: i32) -> (i32, i32) {
    %c0_i32 = arith.constant 0 : i32
    %c0_i32_0 = arith.constant 0 : i32
    %c0_i32_1 = arith.constant 0 : i32
    return %c0_i32, %c0_i32_0 : i32, i32
  }
  func.func @transform_3(%arg0: i32) -> (i32, i32) {
    %c0_i32 = arith.constant 0 : i32
    %c0_i32_0 = arith.constant 0 : i32
    return %c0_i32, %arg0 : i32, i32
  }
}

module attributes {stable_mosaic.version = 11 : i64} {
  func.func @_matmul_stats_kernel(%arg0: i32, %arg1: memref<36x128xbf16, #tpu.memory_space<vmem>>, %arg2: memref<8x36xf32, #tpu.memory_space<vmem>>, %arg3: memref<8x128xf32, #tpu.memory_space<vmem>>, %arg4: memref<8x1xf32, #tpu.memory_space<vmem>>, %arg5: memref<8x1xf32, #tpu.memory_space<vmem>>) attributes {dimension_semantics = [#tpu.dimension_semantics<arbitrary>], iteration_bounds = array<i64: 1>, scalar_prefetch = 0 : i64, scratch_operands = 0 : i64, tpu.core_type = #tpu.core_type<tc>, window_params = [{transform_indices = @transform_0, window_bounds = array<i64: 36, 128>}, {pipeline_mode = #tpu.pipeline_mode<synchronous>, transform_indices = @transform_1, window_bounds = array<i64: 8, 36>}, {transform_indices = @transform_2, window_bounds = array<i64: 8, 128>}, {pipeline_mode = #tpu.pipeline_mode<synchronous>, transform_indices = @transform_3, window_bounds = array<i64: 8, 1>}, {pipeline_mode = #tpu.pipeline_mode<synchronous>, transform_indices = @transform_4, window_bounds = array<i64: 8, 1>}]} {
    %c0_i32 = arith.constant 0 : i32
    %0 = arith.cmpi eq, %arg0, %c0_i32 : i32
    %1 = arith.extui %0 : i1 to i32
    %c0_i32_0 = arith.constant 0 : i32
    %2 = arith.cmpi ne, %1, %c0_i32_0 : i32
    scf.if %2 {
      %cst_16 = arith.constant 0.000000e+00 : f32
      %19 = vector.broadcast %cst_16 : f32 to vector<8x1xf32>
      %c0_17 = arith.constant 0 : index
      %c0_18 = arith.constant 0 : index
      %20 = vector.load %arg4[%c0_17, %c0_18] : memref<8x1xf32, #tpu.memory_space<vmem>>, vector<8x1xf32>
      tpu.vector_store %arg4[%c0_17, %c0_18], %19 {strides = array<i32>} : memref<8x1xf32, #tpu.memory_space<vmem>>, vector<8x1xf32>,
      %cst_19 = arith.constant 0.000000e+00 : f32
      %21 = vector.broadcast %cst_19 : f32 to vector<8x1xf32>
      %c0_20 = arith.constant 0 : index
      %c0_21 = arith.constant 0 : index
      %22 = vector.load %arg5[%c0_20, %c0_21] : memref<8x1xf32, #tpu.memory_space<vmem>>, vector<8x1xf32>
      tpu.vector_store %arg5[%c0_20, %c0_21], %21 {strides = array<i32>} : memref<8x1xf32, #tpu.memory_space<vmem>>, vector<8x1xf32>,
    } else {
    }
    %c0 = arith.constant 0 : index
    %c0_1 = arith.constant 0 : index
    %3 = vector.load %arg2[%c0, %c0_1] : memref<8x36xf32, #tpu.memory_space<vmem>>, vector<8x36xf32>
    %c0_2 = arith.constant 0 : index
    %c0_3 = arith.constant 0 : index
    %4 = vector.load %arg1[%c0_2, %c0_3] : memref<36x128xbf16, #tpu.memory_space<vmem>>, vector<36x128xbf16>
    %5 = arith.extf %4 : vector<36x128xbf16> to vector<36x128xf32>
    %cst = arith.constant dense<0.000000e+00> : vector<8x128xf32>
    %6 = tpu.matmul %3, %5, %cst {dimension_numbers = #tpu.dot_dimension_numbers<[1], [0], [0], [1], [0, 0, 1, 1], [], []>} : vector<8x36xf32>, vector<36x128xf32>, vector<8x128xf32> -> vector<8x128xf32>
    %c0_4 = arith.constant 0 : index
    %c0_5 = arith.constant 0 : index
    %7 = vector.load %arg3[%c0_4, %c0_5] : memref<8x128xf32, #tpu.memory_space<vmem>>, vector<8x128xf32>
    tpu.vector_store %arg3[%c0_4, %c0_5], %6 {strides = array<i32>} : memref<8x128xf32, #tpu.memory_space<vmem>>, vector<8x128xf32>,
    %c0_6 = arith.constant 0 : index
    %c0_7 = arith.constant 0 : index
    %8 = vector.load %arg4[%c0_6, %c0_7] : memref<8x1xf32, #tpu.memory_space<vmem>>, vector<8x1xf32>
    %cst_8 = arith.constant dense<0.000000e+00> : vector<8xf32>
    %9 = vector.multi_reduction <add>, %6, %cst_8 [1] : vector<8x128xf32> to vector<8xf32>
    %10 = vector.shape_cast %9 : vector<8xf32> to vector<8x1xf32>
    %11 = arith.addf %8, %10 : vector<8x1xf32>
    %c0_9 = arith.constant 0 : index
    %c0_10 = arith.constant 0 : index
    %12 = vector.load %arg4[%c0_9, %c0_10] : memref<8x1xf32, #tpu.memory_space<vmem>>, vector<8x1xf32>
    tpu.vector_store %arg4[%c0_9, %c0_10], %11 {strides = array<i32>} : memref<8x1xf32, #tpu.memory_space<vmem>>, vector<8x1xf32>,
    %c0_11 = arith.constant 0 : index
    %c0_12 = arith.constant 0 : index
    %13 = vector.load %arg5[%c0_11, %c0_12] : memref<8x1xf32, #tpu.memory_space<vmem>>, vector<8x1xf32>
    %14 = arith.mulf %6, %6 : vector<8x128xf32>
    %cst_13 = arith.constant dense<0.000000e+00> : vector<8xf32>
    %15 = vector.multi_reduction <add>, %14, %cst_13 [1] : vector<8x128xf32> to vector<8xf32>
    %16 = vector.shape_cast %15 : vector<8xf32> to vector<8x1xf32>
    %17 = arith.addf %13, %16 : vector<8x1xf32>
    %c0_14 = arith.constant 0 : index
    %c0_15 = arith.constant 0 : index
    %18 = vector.load %arg5[%c0_14, %c0_15] : memref<8x1xf32, #tpu.memory_space<vmem>>, vector<8x1xf32>
    tpu.vector_store %arg5[%c0_14, %c0_15], %17 {strides = array<i32>} : memref<8x1xf32, #tpu.memory_space<vmem>>, vector<8x1xf32>,
    return
  }
  func.func @transform_0(%arg0: i32) -> (i32, i32) {
    %c0_i32 = arith.constant 0 : i32
    %c0_i32_0 = arith.constant 0 : i32
    return %c0_i32, %arg0 : i32, i32
  }
  func.func @transform_1(%arg0: i32) -> (i32, i32) {
    %c0_i32 = arith.constant 0 : i32
    %c0_i32_0 = arith.constant 0 : i32
    %c0_i32_1 = arith.constant 0 : i32
    return %c0_i32, %c0_i32_0 : i32, i32
  }
  func.func @transform_2(%arg0: i32) -> (i32, i32) {
    %c0_i32 = arith.constant 0 : i32
    %c0_i32_0 = arith.constant 0 : i32
    return %c0_i32, %arg0 : i32, i32
  }
  func.func @transform_3(%arg0: i32) -> (i32, i32) {
    %c0_i32 = arith.constant 0 : i32
    %c0_i32_0 = arith.constant 0 : i32
    %c0_i32_1 = arith.constant 0 : i32
    return %c0_i32, %c0_i32_0 : i32, i32
  }
  func.func @transform_4(%arg0: i32) -> (i32, i32) {
    %c0_i32 = arith.constant 0 : i32
    %c0_i32_0 = arith.constant 0 : i32
    %c0_i32_1 = arith.constant 0 : i32
    return %c0_i32, %c0_i32_0 : i32, i32
  }
}

module attributes {stable_mosaic.version = 11 : i64} {
  func.func @_matmul_stats_kernel(%arg0: i32, %arg1: memref<72x128xbf16, #tpu.memory_space<vmem>>, %arg2: memref<8x72xf32, #tpu.memory_space<vmem>>, %arg3: memref<8x128xf32, #tpu.memory_space<vmem>>, %arg4: memref<8x1xf32, #tpu.memory_space<vmem>>, %arg5: memref<8x1xf32, #tpu.memory_space<vmem>>) attributes {dimension_semantics = [#tpu.dimension_semantics<arbitrary>], iteration_bounds = array<i64: 1>, scalar_prefetch = 0 : i64, scratch_operands = 0 : i64, tpu.core_type = #tpu.core_type<tc>, window_params = [{transform_indices = @transform_0, window_bounds = array<i64: 72, 128>}, {pipeline_mode = #tpu.pipeline_mode<synchronous>, transform_indices = @transform_1, window_bounds = array<i64: 8, 72>}, {transform_indices = @transform_2, window_bounds = array<i64: 8, 128>}, {pipeline_mode = #tpu.pipeline_mode<synchronous>, transform_indices = @transform_3, window_bounds = array<i64: 8, 1>}, {pipeline_mode = #tpu.pipeline_mode<synchronous>, transform_indices = @transform_4, window_bounds = array<i64: 8, 1>}]} {
    %c0_i32 = arith.constant 0 : i32
    %0 = arith.cmpi eq, %arg0, %c0_i32 : i32
    %1 = arith.extui %0 : i1 to i32
    %c0_i32_0 = arith.constant 0 : i32
    %2 = arith.cmpi ne, %1, %c0_i32_0 : i32
    scf.if %2 {
      %cst_16 = arith.constant 0.000000e+00 : f32
      %19 = vector.broadcast %cst_16 : f32 to vector<8x1xf32>
      %c0_17 = arith.constant 0 : index
      %c0_18 = arith.constant 0 : index
      %20 = vector.load %arg4[%c0_17, %c0_18] : memref<8x1xf32, #tpu.memory_space<vmem>>, vector<8x1xf32>
      tpu.vector_store %arg4[%c0_17, %c0_18], %19 {strides = array<i32>} : memref<8x1xf32, #tpu.memory_space<vmem>>, vector<8x1xf32>,
      %cst_19 = arith.constant 0.000000e+00 : f32
      %21 = vector.broadcast %cst_19 : f32 to vector<8x1xf32>
      %c0_20 = arith.constant 0 : index
      %c0_21 = arith.constant 0 : index
      %22 = vector.load %arg5[%c0_20, %c0_21] : memref<8x1xf32, #tpu.memory_space<vmem>>, vector<8x1xf32>
      tpu.vector_store %arg5[%c0_20, %c0_21], %21 {strides = array<i32>} : memref<8x1xf32, #tpu.memory_space<vmem>>, vector<8x1xf32>,
    } else {
    }
    %c0 = arith.constant 0 : index
    %c0_1 = arith.constant 0 : index
    %3 = vector.load %arg2[%c0, %c0_1] : memref<8x72xf32, #tpu.memory_space<vmem>>, vector<8x72xf32>
    %c0_2 = arith.constant 0 : index
    %c0_3 = arith.constant 0 : index
    %4 = vector.load %arg1[%c0_2, %c0_3] : memref<72x128xbf16, #tpu.memory_space<vmem>>, vector<72x128xbf16>
    %5 = arith.extf %4 : vector<72x128xbf16> to vector<72x128xf32>
    %cst = arith.constant dense<0.000000e+00> : vector<8x128xf32>
    %6 = tpu.matmul %3, %5, %cst {dimension_numbers = #tpu.dot_dimension_numbers<[1], [0], [0], [1], [0, 0, 1, 1], [], []>} : vector<8x72xf32>, vector<72x128xf32>, vector<8x128xf32> -> vector<8x128xf32>
    %c0_4 = arith.constant 0 : index
    %c0_5 = arith.constant 0 : index
    %7 = vector.load %arg3[%c0_4, %c0_5] : memref<8x128xf32, #tpu.memory_space<vmem>>, vector<8x128xf32>
    tpu.vector_store %arg3[%c0_4, %c0_5], %6 {strides = array<i32>} : memref<8x128xf32, #tpu.memory_space<vmem>>, vector<8x128xf32>,
    %c0_6 = arith.constant 0 : index
    %c0_7 = arith.constant 0 : index
    %8 = vector.load %arg4[%c0_6, %c0_7] : memref<8x1xf32, #tpu.memory_space<vmem>>, vector<8x1xf32>
    %cst_8 = arith.constant dense<0.000000e+00> : vector<8xf32>
    %9 = vector.multi_reduction <add>, %6, %cst_8 [1] : vector<8x128xf32> to vector<8xf32>
    %10 = vector.shape_cast %9 : vector<8xf32> to vector<8x1xf32>
    %11 = arith.addf %8, %10 : vector<8x1xf32>
    %c0_9 = arith.constant 0 : index
    %c0_10 = arith.constant 0 : index
    %12 = vector.load %arg4[%c0_9, %c0_10] : memref<8x1xf32, #tpu.memory_space<vmem>>, vector<8x1xf32>
    tpu.vector_store %arg4[%c0_9, %c0_10], %11 {strides = array<i32>} : memref<8x1xf32, #tpu.memory_space<vmem>>, vector<8x1xf32>,
    %c0_11 = arith.constant 0 : index
    %c0_12 = arith.constant 0 : index
    %13 = vector.load %arg5[%c0_11, %c0_12] : memref<8x1xf32, #tpu.memory_space<vmem>>, vector<8x1xf32>
    %14 = arith.mulf %6, %6 : vector<8x128xf32>
    %cst_13 = arith.constant dense<0.000000e+00> : vector<8xf32>
    %15 = vector.multi_reduction <add>, %14, %cst_13 [1] : vector<8x128xf32> to vector<8xf32>
    %16 = vector.shape_cast %15 : vector<8xf32> to vector<8x1xf32>
    %17 = arith.addf %13, %16 : vector<8x1xf32>
    %c0_14 = arith.constant 0 : index
    %c0_15 = arith.constant 0 : index
    %18 = vector.load %arg5[%c0_14, %c0_15] : memref<8x1xf32, #tpu.memory_space<vmem>>, vector<8x1xf32>
    tpu.vector_store %arg5[%c0_14, %c0_15], %17 {strides = array<i32>} : memref<8x1xf32, #tpu.memory_space<vmem>>, vector<8x1xf32>,
    return
  }
  func.func @transform_0(%arg0: i32) -> (i32, i32) {
    %c0_i32 = arith.constant 0 : i32
    %c0_i32_0 = arith.constant 0 : i32
    return %c0_i32, %arg0 : i32, i32
  }
  func.func @transform_1(%arg0: i32) -> (i32, i32) {
    %c0_i32 = arith.constant 0 : i32
    %c0_i32_0 = arith.constant 0 : i32
    %c0_i32_1 = arith.constant 0 : i32
    return %c0_i32, %c0_i32_0 : i32, i32
  }
  func.func @transform_2(%arg0: i32) -> (i32, i32) {
    %c0_i32 = arith.constant 0 : i32
    %c0_i32_0 = arith.constant 0 : i32
    return %c0_i32, %arg0 : i32, i32
  }
  func.func @transform_3(%arg0: i32) -> (i32, i32) {
    %c0_i32 = arith.constant 0 : i32
    %c0_i32_0 = arith.constant 0 : i32
    %c0_i32_1 = arith.constant 0 : i32
    return %c0_i32, %c0_i32_0 : i32, i32
  }
  func.func @transform_4(%arg0: i32) -> (i32, i32) {
    %c0_i32 = arith.constant 0 : i32
    %c0_i32_0 = arith.constant 0 : i32
    %c0_i32_1 = arith.constant 0 : i32
    return %c0_i32, %c0_i32_0 : i32, i32
  }
}

module attributes {stable_mosaic.version = 11 : i64} {
  func.func @_bn_swish_kernel(%arg0: i32, %arg1: memref<8x128xf32, #tpu.memory_space<vmem>>, %arg2: memref<8x1xf32, #tpu.memory_space<vmem>>, %arg3: memref<8x1xf32, #tpu.memory_space<vmem>>, %arg4: memref<8x128xbf16, #tpu.memory_space<vmem>>) attributes {dimension_semantics = [#tpu.dimension_semantics<parallel>], iteration_bounds = array<i64: 1>, scalar_prefetch = 0 : i64, scratch_operands = 0 : i64, tpu.core_type = #tpu.core_type<tc>, window_params = [{transform_indices = @transform_0, window_bounds = array<i64: 8, 128>}, {pipeline_mode = #tpu.pipeline_mode<synchronous>, transform_indices = @transform_1, window_bounds = array<i64: 8, 1>}, {pipeline_mode = #tpu.pipeline_mode<synchronous>, transform_indices = @transform_2, window_bounds = array<i64: 8, 1>}, {transform_indices = @transform_3, window_bounds = array<i64: 8, 128>}]} {
    %c0 = arith.constant 0 : index
    %c0_0 = arith.constant 0 : index
    %0 = vector.load %arg1[%c0, %c0_0] : memref<8x128xf32, #tpu.memory_space<vmem>>, vector<8x128xf32>
    %c0_1 = arith.constant 0 : index
    %c0_2 = arith.constant 0 : index
    %1 = vector.load %arg2[%c0_1, %c0_2] : memref<8x1xf32, #tpu.memory_space<vmem>>, vector<8x1xf32>
    %2 = vector.broadcast %1 : vector<8x1xf32> to vector<8x128xf32>
    %3 = arith.mulf %0, %2 : vector<8x128xf32>
    %c0_3 = arith.constant 0 : index
    %c0_4 = arith.constant 0 : index
    %4 = vector.load %arg3[%c0_3, %c0_4] : memref<8x1xf32, #tpu.memory_space<vmem>>, vector<8x1xf32>
    %5 = vector.broadcast %4 : vector<8x1xf32> to vector<8x128xf32>
    %6 = arith.addf %3, %5 : vector<8x128xf32>
    %7 = arith.negf %6 : vector<8x128xf32>
    %8 = math.exp %7 : vector<8x128xf32>
    %cst = arith.constant 1.000000e+00 : f32
    %9 = vector.broadcast %cst : f32 to vector<8x128xf32>
    %10 = arith.addf %9, %8 : vector<8x128xf32>
    %11 = arith.divf %9, %10 : vector<8x128xf32>
    %12 = arith.mulf %6, %11 : vector<8x128xf32>
    %13 = arith.truncf %12 : vector<8x128xf32> to vector<8x128xbf16>
    %c0_5 = arith.constant 0 : index
    %c0_6 = arith.constant 0 : index
    %14 = vector.load %arg4[%c0_5, %c0_6] : memref<8x128xbf16, #tpu.memory_space<vmem>>, vector<8x128xbf16>
    tpu.vector_store %arg4[%c0_5, %c0_6], %13 {strides = array<i32>} : memref<8x128xbf16, #tpu.memory_space<vmem>>, vector<8x128xbf16>,
    return
  }
  func.func @transform_0(%arg0: i32) -> (i32, i32) {
    %c0_i32 = arith.constant 0 : i32
    %c0_i32_0 = arith.constant 0 : i32
    return %c0_i32, %arg0 : i32, i32
  }
  func.func @transform_1(%arg0: i32) -> (i32, i32) {
    %c0_i32 = arith.constant 0 : i32
    %c0_i32_0 = arith.constant 0 : i32
    %c0_i32_1 = arith.constant 0 : i32
    return %c0_i32, %c0_i32_0 : i32, i32
  }
  func.func @transform_2(%arg0: i32) -> (i32, i32) {
    %c0_i32 = arith.constant 0 : i32
    %c0_i32_0 = arith.constant 0 : i32
    %c0_i32_1 = arith.constant 0 : i32
    return %c0_i32, %c0_i32_0 : i32, i32
  }
  func.func @transform_3(%arg0: i32) -> (i32, i32) {
    %c0_i32 = arith.constant 0 : i32
    %c0_i32_0 = arith.constant 0 : i32
    return %c0_i32, %arg0 : i32, i32
  }
}

module attributes {stable_mosaic.version = 11 : i64} {
  func.func @_matmul_stats_kernel(%arg0: i32, %arg1: memref<72x32xbf16, #tpu.memory_space<vmem>>, %arg2: memref<16x72xf32, #tpu.memory_space<vmem>>, %arg3: memref<16x32xf32, #tpu.memory_space<vmem>>, %arg4: memref<16x1xf32, #tpu.memory_space<vmem>>, %arg5: memref<16x1xf32, #tpu.memory_space<vmem>>) attributes {dimension_semantics = [#tpu.dimension_semantics<arbitrary>], iteration_bounds = array<i64: 1>, scalar_prefetch = 0 : i64, scratch_operands = 0 : i64, tpu.core_type = #tpu.core_type<tc>, window_params = [{transform_indices = @transform_0, window_bounds = array<i64: 72, 32>}, {pipeline_mode = #tpu.pipeline_mode<synchronous>, transform_indices = @transform_1, window_bounds = array<i64: 16, 72>}, {transform_indices = @transform_2, window_bounds = array<i64: 16, 32>}, {pipeline_mode = #tpu.pipeline_mode<synchronous>, transform_indices = @transform_3, window_bounds = array<i64: 16, 1>}, {pipeline_mode = #tpu.pipeline_mode<synchronous>, transform_indices = @transform_4, window_bounds = array<i64: 16, 1>}]} {
    %c0_i32 = arith.constant 0 : i32
    %0 = arith.cmpi eq, %arg0, %c0_i32 : i32
    %1 = arith.extui %0 : i1 to i32
    %c0_i32_0 = arith.constant 0 : i32
    %2 = arith.cmpi ne, %1, %c0_i32_0 : i32
    scf.if %2 {
      %cst_16 = arith.constant 0.000000e+00 : f32
      %19 = vector.broadcast %cst_16 : f32 to vector<16x1xf32>
      %c0_17 = arith.constant 0 : index
      %c0_18 = arith.constant 0 : index
      %20 = vector.load %arg4[%c0_17, %c0_18] : memref<16x1xf32, #tpu.memory_space<vmem>>, vector<16x1xf32>
      tpu.vector_store %arg4[%c0_17, %c0_18], %19 {strides = array<i32>} : memref<16x1xf32, #tpu.memory_space<vmem>>, vector<16x1xf32>,
      %cst_19 = arith.constant 0.000000e+00 : f32
      %21 = vector.broadcast %cst_19 : f32 to vector<16x1xf32>
      %c0_20 = arith.constant 0 : index
      %c0_21 = arith.constant 0 : index
      %22 = vector.load %arg5[%c0_20, %c0_21] : memref<16x1xf32, #tpu.memory_space<vmem>>, vector<16x1xf32>
      tpu.vector_store %arg5[%c0_20, %c0_21], %21 {strides = array<i32>} : memref<16x1xf32, #tpu.memory_space<vmem>>, vector<16x1xf32>,
    } else {
    }
    %c0 = arith.constant 0 : index
    %c0_1 = arith.constant 0 : index
    %3 = vector.load %arg2[%c0, %c0_1] : memref<16x72xf32, #tpu.memory_space<vmem>>, vector<16x72xf32>
    %c0_2 = arith.constant 0 : index
    %c0_3 = arith.constant 0 : index
    %4 = vector.load %arg1[%c0_2, %c0_3] : memref<72x32xbf16, #tpu.memory_space<vmem>>, vector<72x32xbf16>
    %5 = arith.extf %4 : vector<72x32xbf16> to vector<72x32xf32>
    %cst = arith.constant dense<0.000000e+00> : vector<16x32xf32>
    %6 = tpu.matmul %3, %5, %cst {dimension_numbers = #tpu.dot_dimension_numbers<[1], [0], [0], [1], [0, 0, 1, 1], [], []>} : vector<16x72xf32>, vector<72x32xf32>, vector<16x32xf32> -> vector<16x32xf32>
    %c0_4 = arith.constant 0 : index
    %c0_5 = arith.constant 0 : index
    %7 = vector.load %arg3[%c0_4, %c0_5] : memref<16x32xf32, #tpu.memory_space<vmem>>, vector<16x32xf32>
    tpu.vector_store %arg3[%c0_4, %c0_5], %6 {strides = array<i32>} : memref<16x32xf32, #tpu.memory_space<vmem>>, vector<16x32xf32>,
    %c0_6 = arith.constant 0 : index
    %c0_7 = arith.constant 0 : index
    %8 = vector.load %arg4[%c0_6, %c0_7] : memref<16x1xf32, #tpu.memory_space<vmem>>, vector<16x1xf32>
    %cst_8 = arith.constant dense<0.000000e+00> : vector<16xf32>
    %9 = vector.multi_reduction <add>, %6, %cst_8 [1] : vector<16x32xf32> to vector<16xf32>
    %10 = vector.shape_cast %9 : vector<16xf32> to vector<16x1xf32>
    %11 = arith.addf %8, %10 : vector<16x1xf32>
    %c0_9 = arith.constant 0 : index
    %c0_10 = arith.constant 0 : index
    %12 = vector.load %arg4[%c0_9, %c0_10] : memref<16x1xf32, #tpu.memory_space<vmem>>, vector<16x1xf32>
    tpu.vector_store %arg4[%c0_9, %c0_10], %11 {strides = array<i32>} : memref<16x1xf32, #tpu.memory_space<vmem>>, vector<16x1xf32>,
    %c0_11 = arith.constant 0 : index
    %c0_12 = arith.constant 0 : index
    %13 = vector.load %arg5[%c0_11, %c0_12] : memref<16x1xf32, #tpu.memory_space<vmem>>, vector<16x1xf32>
    %14 = arith.mulf %6, %6 : vector<16x32xf32>
    %cst_13 = arith.constant dense<0.000000e+00> : vector<16xf32>
    %15 = vector.multi_reduction <add>, %14, %cst_13 [1] : vector<16x32xf32> to vector<16xf32>
    %16 = vector.shape_cast %15 : vector<16xf32> to vector<16x1xf32>
    %17 = arith.addf %13, %16 : vector<16x1xf32>
    %c0_14 = arith.constant 0 : index
    %c0_15 = arith.constant 0 : index
    %18 = vector.load %arg5[%c0_14, %c0_15] : memref<16x1xf32, #tpu.memory_space<vmem>>, vector<16x1xf32>
    tpu.vector_store %arg5[%c0_14, %c0_15], %17 {strides = array<i32>} : memref<16x1xf32, #tpu.memory_space<vmem>>, vector<16x1xf32>,
    return
  }
  func.func @transform_0(%arg0: i32) -> (i32, i32) {
    %c0_i32 = arith.constant 0 : i32
    %c0_i32_0 = arith.constant 0 : i32
    return %c0_i32, %arg0 : i32, i32
  }
  func.func @transform_1(%arg0: i32) -> (i32, i32) {
    %c0_i32 = arith.constant 0 : i32
    %c0_i32_0 = arith.constant 0 : i32
    %c0_i32_1 = arith.constant 0 : i32
    return %c0_i32, %c0_i32_0 : i32, i32
  }
  func.func @transform_2(%arg0: i32) -> (i32, i32) {
    %c0_i32 = arith.constant 0 : i32
    %c0_i32_0 = arith.constant 0 : i32
    return %c0_i32, %arg0 : i32, i32
  }
  func.func @transform_3(%arg0: i32) -> (i32, i32) {
    %c0_i32 = arith.constant 0 : i32
    %c0_i32_0 = arith.constant 0 : i32
    %c0_i32_1 = arith.constant 0 : i32
    return %c0_i32, %c0_i32_0 : i32, i32
  }
  func.func @transform_4(%arg0: i32) -> (i32, i32) {
    %c0_i32 = arith.constant 0 : i32
    %c0_i32_0 = arith.constant 0 : i32
    %c0_i32_1 = arith.constant 0 : i32
    return %c0_i32, %c0_i32_0 : i32, i32
  }
}

module attributes {stable_mosaic.version = 11 : i64} {
  func.func @_bn_swish_kernel(%arg0: i32, %arg1: memref<16x32xf32, #tpu.memory_space<vmem>>, %arg2: memref<16x1xf32, #tpu.memory_space<vmem>>, %arg3: memref<16x1xf32, #tpu.memory_space<vmem>>, %arg4: memref<16x32xf32, #tpu.memory_space<vmem>>) attributes {dimension_semantics = [#tpu.dimension_semantics<parallel>], iteration_bounds = array<i64: 1>, scalar_prefetch = 0 : i64, scratch_operands = 0 : i64, tpu.core_type = #tpu.core_type<tc>, window_params = [{transform_indices = @transform_0, window_bounds = array<i64: 16, 32>}, {pipeline_mode = #tpu.pipeline_mode<synchronous>, transform_indices = @transform_1, window_bounds = array<i64: 16, 1>}, {pipeline_mode = #tpu.pipeline_mode<synchronous>, transform_indices = @transform_2, window_bounds = array<i64: 16, 1>}, {transform_indices = @transform_3, window_bounds = array<i64: 16, 32>}]} {
    %c0 = arith.constant 0 : index
    %c0_0 = arith.constant 0 : index
    %0 = vector.load %arg1[%c0, %c0_0] : memref<16x32xf32, #tpu.memory_space<vmem>>, vector<16x32xf32>
    %c0_1 = arith.constant 0 : index
    %c0_2 = arith.constant 0 : index
    %1 = vector.load %arg2[%c0_1, %c0_2] : memref<16x1xf32, #tpu.memory_space<vmem>>, vector<16x1xf32>
    %2 = vector.broadcast %1 : vector<16x1xf32> to vector<16x32xf32>
    %3 = arith.mulf %0, %2 : vector<16x32xf32>
    %c0_3 = arith.constant 0 : index
    %c0_4 = arith.constant 0 : index
    %4 = vector.load %arg3[%c0_3, %c0_4] : memref<16x1xf32, #tpu.memory_space<vmem>>, vector<16x1xf32>
    %5 = vector.broadcast %4 : vector<16x1xf32> to vector<16x32xf32>
    %6 = arith.addf %3, %5 : vector<16x32xf32>
    %7 = arith.negf %6 : vector<16x32xf32>
    %8 = math.exp %7 : vector<16x32xf32>
    %cst = arith.constant 1.000000e+00 : f32
    %9 = vector.broadcast %cst : f32 to vector<16x32xf32>
    %10 = arith.addf %9, %8 : vector<16x32xf32>
    %11 = arith.divf %9, %10 : vector<16x32xf32>
    %12 = arith.mulf %6, %11 : vector<16x32xf32>
    %c0_5 = arith.constant 0 : index
    %c0_6 = arith.constant 0 : index
    %13 = vector.load %arg4[%c0_5, %c0_6] : memref<16x32xf32, #tpu.memory_space<vmem>>, vector<16x32xf32>
    tpu.vector_store %arg4[%c0_5, %c0_6], %12 {strides = array<i32>} : memref<16x32xf32, #tpu.memory_space<vmem>>, vector<16x32xf32>,
    return
  }
  func.func @transform_0(%arg0: i32) -> (i32, i32) {
    %c0_i32 = arith.constant 0 : i32
    %c0_i32_0 = arith.constant 0 : i32
    return %c0_i32, %arg0 : i32, i32
  }
  func.func @transform_1(%arg0: i32) -> (i32, i32) {
    %c0_i32 = arith.constant 0 : i32
    %c0_i32_0 = arith.constant 0 : i32
    %c0_i32_1 = arith.constant 0 : i32
    return %c0_i32, %c0_i32_0 : i32, i32
  }
  func.func @transform_2(%arg0: i32) -> (i32, i32) {
    %c0_i32 = arith.constant 0 : i32
    %c0_i32_0 = arith.constant 0 : i32
    %c0_i32_1 = arith.constant 0 : i32
    return %c0_i32, %c0_i32_0 : i32, i32
  }
  func.func @transform_3(%arg0: i32) -> (i32, i32) {
    %c0_i32 = arith.constant 0 : i32
    %c0_i32_0 = arith.constant 0 : i32
    return %c0_i32, %arg0 : i32, i32
  }
}

</mosaic_0001>

<llo_original>
// kernel: encoder_block_forward.9
$region0: #{encoder_block_forward.9}
  #allocation0 [shape = 'u32[]', space=smem, size = 0x4, offset = 0x4, fixed_abs, tag = 'smem constant byte address 0x4 - core index']
  #allocation1 [shape = 'u32[72,128]{1,0:T(1,128)}', space=vmem, size = 0x9000, scoped, tag = 'internal scratch']
  %s0 = inlined_call_operand.vmem [shape: f32[4,512], index: 0, kind: input, shape index: {}]
  %s1 = inlined_call_operand.vmem [shape: f32[4,1], index: 1, kind: input, shape index: {}]
  %s2 = inlined_call_operand.vmem [shape: f32[4,1], index: 2, kind: input, shape index: {}]
  %s3 = inlined_call_operand.vmem [shape: bf16[4,512], index: 3, kind: output, shape index: {}]
  %s4 = sld [smem:[#allocation0]]
  $region45: #{encoder_block_forward.9} parent=0
    _
  %s6 = ssub.s32 1, %s4
  %s7 = scalar_select 0, %s6, %s4
  loop: start=0, step=1, limit=6
  $region2: #{encoder_block_forward.9} parent=0 // loop_pre_header
    _
  $region3: #{encoder_block_forward.9} parent=0 // loop_header
    %s9 = sphi 0, %s13
    %p10 = scmp.ge.s32.totalorder %s9, 6
    %s19 = sphi 0, %s21
    %s22 = sphi 0, %s19
    %s23 = sphi 0, %s22
    %s39 = sphi 0, %s23
    %s43 = sphi 0, %s43
    %s45 = sphi 0, %s43
    %s46 = sphi 0, %s45
    %s60 = sphi 0, %s46
    %s64 = sphi 0, %s64
    %s66 = sphi 0, %s64
    %s67 = sphi 0, %s66
    %s81 = sphi 0, %s67
    %s87 = sphi 0, %s89
    %s90 = sphi 0, %s87
    %s91 = sphi 0, %s90
    %s107 = sphi 0, %s91
  $region4: #{encoder_block_forward.9} parent=0 // loop_header_branch
    %12 = sbr.rel (%p10) target = $region8
  $region5: #{encoder_block_forward.9} parent=0 // loop_body
    %s14 = ssub.s32 %s9, 1
    %s15 = ssub.s32 %s9, 2
    %s16 = sadd.s32 %s9, 1
    %s17 = ssub.s32 %s9, %s16
    %p18 = scmp.eq.s32.totalorder %s17, 0
    %s20 = sadd.s32 %s19, 1
    %s21 = scalar_select %p18, %s19, %s20
    %p24 = pneg %p18
    %p25 = scmp.eq.s32.totalorder %s9, 3
    %p26 = por %p24, %p25
    %p27 = scmp.ne.s32.totalorder %s19, %s22
    %p28 = scmp.eq.s32.totalorder %s9, 0
    %p29 = por %p27, %p28
    %p30 = scmp.ne.s32.totalorder %s19, %s22
    %p31 = scmp.eq.s32.totalorder %s14, 3
    %p32 = por %p30, %p31
    %p33 = scmp.ne.s32.totalorder %s22, %s23
    %p34 = scmp.eq.s32.totalorder %s14, 0
    %p35 = por %p33, %p34
    %p36 = scmp.ne.s32.totalorder %s22, %s23
    %p37 = scmp.eq.s32.totalorder %s15, 3
    %p38 = por %p36, %p37
    %p40 = scmp.ne.s32.totalorder %s23, %s39
    %p41 = scmp.eq.s32.totalorder %s15, 0
    %p42 = por %p40, %p41
    %s44 = sadd.s32 %s43, 1
    %p47 = scmp.eq.s32.totalorder %s9, 3
    %p48 = scmp.ne.s32.totalorder %s43, %s45
    %p49 = scmp.eq.s32.totalorder %s9, 0
    %p50 = por %p48, %p49
    %p51 = scmp.ne.s32.totalorder %s43, %s45
    %p52 = scmp.eq.s32.totalorder %s14, 3
    %p53 = por %p51, %p52
    %p54 = scmp.ne.s32.totalorder %s45, %s46
    %p55 = scmp.eq.s32.totalorder %s14, 0
    %p56 = por %p54, %p55
    %p57 = scmp.ne.s32.totalorder %s45, %s46
    %p58 = scmp.eq.s32.totalorder %s15, 3
    %p59 = por %p57, %p58
    %p61 = scmp.ne.s32.totalorder %s46, %s60
    %p62 = scmp.eq.s32.totalorder %s15, 0
    %p63 = por %p61, %p62
    %s65 = sadd.s32 %s64, 1
    %p68 = scmp.eq.s32.totalorder %s9, 3
    %p69 = scmp.ne.s32.totalorder %s64, %s66
    %p70 = scmp.eq.s32.totalorder %s9, 0
    %p71 = por %p69, %p70
    %p72 = scmp.ne.s32.totalorder %s64, %s66
    %p73 = scmp.eq.s32.totalorder %s14, 3
    %p74 = por %p72, %p73
    %p75 = scmp.ne.s32.totalorder %s66, %s67
    %p76 = scmp.eq.s32.totalorder %s14, 0
    %p77 = por %p75, %p76
    %p78 = scmp.ne.s32.totalorder %s66, %s67
    %p79 = scmp.eq.s32.totalorder %s15, 3
    %p80 = por %p78, %p79
    %p82 = scmp.ne.s32.totalorder %s67, %s81
    %p83 = scmp.eq.s32.totalorder %s15, 0
    %p84 = por %p82, %p83
    %s85 = ssub.s32 %s9, %s16
    %p86 = scmp.eq.s32.totalorder %s85, 0
    %s88 = sadd.s32 %s87, 1
    %s89 = scalar_select %p86, %s87, %s88
    %p92 = pneg %p86
    %p93 = scmp.eq.s32.totalorder %s9, 3
    %p94 = por %p92, %p93
    %p95 = scmp.ne.s32.totalorder %s87, %s90
    %p96 = scmp.eq.s32.totalorder %s9, 0
    %p97 = por %p95, %p96
    %p98 = scmp.ne.s32.totalorder %s87, %s90
    %p99 = scmp.eq.s32.totalorder %s14, 3
    %p100 = por %p98, %p99
    %p101 = scmp.ne.s32.totalorder %s90, %s91
    %p102 = scmp.eq.s32.totalorder %s14, 0
    %p103 = por %p101, %p102
    %p104 = scmp.ne.s32.totalorder %s90, %s91
    %p105 = scmp.eq.s32.totalorder %s15, 3
    %p106 = por %p104, %p105
    %p108 = scmp.ne.s32.totalorder %s91, %s107
    %p109 = scmp.eq.s32.totalorder %s15, 0
    %p110 = por %p108, %p109
    %p111 = scmp.le.s32.totalorder 1, %s9
    %p112 = scmp.lt.s32.totalorder %s9, 5
    %p113 = pnand %p111, %p112
    %p114 = pneg %p113
    // Predicated region
    $region9: #{encoder_block_forward.9} parent=5 // pred_check
      _
    $region10: #{encoder_block_forward.9} parent=5 // pred_check_branch
      %116 = sbr.rel (%p113) target = $region12
    $region11: #{encoder_block_forward.9} parent=5 // pred_region
      %s117 = ssub.s32 %s9, 1
      // Predicated region
      $region13: #{encoder_block_forward.9} parent=11 // pred_check
        %p118 = pneg %p56
      $region14: #{encoder_block_forward.9} parent=11 // pred_check_branch
        %120 = sbr.rel (%p118) target = $region16
      $region15: #{encoder_block_forward.9} parent=11 // pred_region
        _
      $region16: #{encoder_block_forward.9} parent=11 // pred_fallthru
        _
      // Predicated region
      $region17: #{encoder_block_forward.9} parent=11 // pred_check
        %p121 = pneg %p77
      $region18: #{encoder_block_forward.9} parent=11 // pred_check_branch
        %123 = sbr.rel (%p121) target = $region20
      $region19: #{encoder_block_forward.9} parent=11 // pred_region
        _
      $region20: #{encoder_block_forward.9} parent=11 // pred_fallthru
        _
    $region12: #{encoder_block_forward.9} parent=5 // pred_fallthru
      _
    %p124 = scmp.lt.s32.totalorder %s9, 4
    // Predicated region
    $region21: #{encoder_block_forward.9} parent=5 // pred_check
      %p125 = pneg %p124
    $region22: #{encoder_block_forward.9} parent=5 // pred_check_branch
      %127 = sbr.rel (%p125) target = $region24
    $region23: #{encoder_block_forward.9} parent=5 // pred_region
      // Predicated region
      $region25: #{encoder_block_forward.9} parent=23 // pred_check
        %p128 = pneg %p29
      $region26: #{encoder_block_forward.9} parent=23 // pred_check_branch
        %130 = sbr.rel (%p128) target = $region28
      $region27: #{encoder_block_forward.9} parent=23 // pred_region
        %p131 = scmp.lt.s32.totalorder %s9, 3
        %s132 = scalar_select %p131, %s9, 3
        %s133 = smul.addr %s132, 4
        %s134 = scalar_lea.vmem %s0, %s133
      $region28: #{encoder_block_forward.9} parent=23 // pred_fallthru
        _
    $region24: #{encoder_block_forward.9} parent=5 // pred_fallthru
      _
    %p135 = scmp.le.s32.totalorder 1, %s9
    %p136 = scmp.lt.s32.totalorder %s9, 5
    %p137 = pnand %p135, %p136
    %p138 = pneg %p137
    // Predicated region
    $region29: #{encoder_block_forward.9} parent=5 // pred_check
      _
    $region30: #{encoder_block_forward.9} parent=5 // pred_check_branch
      %140 = sbr.rel (%p137) target = $region32
    $region31: #{encoder_block_forward.9} parent=5 // pred_region
      %s141 = ssub.s32 %s9, 1
      %p142 = scmp.lt.s32.totalorder %s14, 3
      %s143 = scalar_select %p142, %s14, 3
      %s144 = smul.addr %s143, 4
      %s145 = scalar_lea.vmem %s0, %s144
      %p146 = pneg %p35
      %p147 = pneg %p32
      %p148 = pneg %p56
      %p149 = pneg %p53
      %p150 = pneg %p77
      %p151 = pneg %p74
      %p152 = pneg %p103
      %p153 = pneg %p100
      %p154 = scmp.lt.s32.totalorder %s14, 3
      %s155 = scalar_select %p154, %s14, 3
      %s156 = smul.addr %s155, 2
      %s157 = scalar_lea.vmem %s3, %s156
      %p158 = scmp.lt.s32.totalorder %s14, 3
      %s159 = scalar_select %p158, %s14, 3
      %s160 = smul.addr %s159, 4
      %s161 = scalar_lea.vmem %s0, %s160
      %p162 = scmp.lt.s32.totalorder %s14, 3
      %s163 = scalar_select %p162, %s14, 3
      %s164 = smul.addr %s163, 2
      %s165 = scalar_lea.vmem %s3, %s164
      %v166 = vld [vmem:[%s161] sm:$0xf]
      %v167 = vld [vmem:[%s1] sm:$0xf]
      %169 = vset.pattern.permute.xlu0 0
      %170 = vperm.xlu0 %169, %v167
      %v171 = vpop.permute.xlu0 %170
      %v173 = vmul.f32 %v166, %v171
      %v174 = vld [vmem:[%s2] sm:$0xf]
      %176 = vset.pattern.permute.xlu0 0
      %177 = vperm.xlu0 %176, %v174
      %v178 = vpop.permute.xlu0 %177
      %v180 = vadd.f32 %v173, %v178
      %v181 = vxor.u32 %v180, 2147483648
      %v182 = vmul.f32 %v181, 1.442695
      %v183 = vpow.pop %v182
      %v184 = vadd.f32 %v183, 1.0
      %v185 = vrcp.pop %v184
      %v186 = vmul.f32 %v184, %v185
      %v187 = vsub.f32 1.0, %v186
      %v188 = vmul.f32 %v185, %v187
      %v189 = vadd.f32 %v185, %v188
      %vm190 = vweird.f32 %v184
      %vm191 = vweird.f32 %v185
      %vm192 = vmor %vm190, %vm191
      %v193 = vsel %vm192, %v185, %v189
      %v194 = vand.u32 2147483647, %v184
      %vm195 = vcmp.eq.f32.partialorder %v194, 8.507059e+37
      %v196 = vand.u32 %v184, 2147483648
      %v197 = vor.u32 1.1754944e-38, %v196
      %v198 = vsel %vm195, %v197, %v193
      %v199 = vmul.f32 1.0, %v198
      %v200 = vmul.f32 %v180, %v199
      %v201 = vpack.c.bf16 %v200, %v200
      %202 = vst [vmem:[%s165] sm:$0x3] %v201
      %p203 = scmp.lt.s32.totalorder %s14, 3
      %s204 = scalar_select %p203, %s14, 3
      %s205 = smul.addr %s204, 2
      %s206 = scalar_lea.vmem %s3, %s205
      // Predicated region
      $region33: #{encoder_block_forward.9} parent=31 // pred_check
        %p207 = pneg %p100
      $region34: #{encoder_block_forward.9} parent=31 // pred_check_branch
        %209 = sbr.rel (%p207) target = $region36
      $region35: #{encoder_block_forward.9} parent=31 // pred_region
        _
      $region36: #{encoder_block_forward.9} parent=31 // pred_fallthru
        _
    $region32: #{encoder_block_forward.9} parent=5 // pred_fallthru
      _
    %p210 = scmp.le.s32.totalorder 2, %s9
    // Predicated region
    $region37: #{encoder_block_forward.9} parent=5 // pred_check
      %p211 = pneg %p210
    $region38: #{encoder_block_forward.9} parent=5 // pred_check_branch
      %213 = sbr.rel (%p211) target = $region40
    $region39: #{encoder_block_forward.9} parent=5 // pred_region
      %s214 = ssub.s32 %s9, 2
      // Predicated region
      $region41: #{encoder_block_forward.9} parent=39 // pred_check
        %p215 = pneg %p106
      $region42: #{encoder_block_forward.9} parent=39 // pred_check_branch
        %217 = sbr.rel (%p215) target = $region44
      $region43: #{encoder_block_forward.9} parent=39 // pred_region
        %p218 = scmp.lt.s32.totalorder %s15, 3
        %s219 = scalar_select %p218, %s15, 3
        %s220 = smul.addr %s219, 2
        %s221 = scalar_lea.vmem %s3, %s220
      $region44: #{encoder_block_forward.9} parent=39 // pred_fallthru
        _
    $region40: #{encoder_block_forward.9} parent=5 // pred_fallthru
      _
  $region6: #{encoder_block_forward.9} parent=0 // loop_footer
    %s13 = sadd.s32 1, %s9
  $region7: #{encoder_block_forward.9} parent=0 // loop_footer_branch
    %8 = sbr.rel target = $region3
  $region8: #{encoder_block_forward.9} parent=0 // loop_exit
    _

// kernel: encoder_block_forward.8
$region0: #{encoder_block_forward.8}
  #allocation0 [shape = 'u32[]', space=smem, size = 0x4, offset = 0x4, fixed_abs, tag = 'smem constant byte address 0x4 - core index']
  #allocation1 [shape = 'u32[72,128]{1,0:T(1,128)}', space=vmem, size = 0x9000, scoped, tag = 'internal scratch']
  %s0 = inlined_call_operand.vmem [shape: bf16[36,512], index: 0, kind: input, shape index: {}]
  %s1 = inlined_call_operand.vmem [shape: f32[4,36], index: 1, kind: input, shape index: {}]
  %s2 = inlined_call_operand.vmem [shape: f32[4,512], index: 2, kind: output, shape index: {0}]
  %s3 = inlined_call_operand.vmem [shape: f32[4,1], index: 3, kind: output, shape index: {1}]
  %s4 = inlined_call_operand.vmem [shape: f32[4,1], index: 4, kind: output, shape index: {2}]
  %5 = xla_tuple %s2, %s3, %s4
  %s6 = sld [smem:[#allocation0]]
  $region102: #{encoder_block_forward.8} parent=0
    _
  %s8 = ssub.s32 1, %s6
  %s9 = scalar_select 0, %s8, %s6
  $region1: #{encoder_block_forward.8} parent=0
    #allocation2 [shape = 'u8[20480]{0}', space=vmem, size = 0x5000, scoped, tag = 'input window, operand 0']
    loop: start=0, step=1, limit=6
    $region2: #{encoder_block_forward.8} parent=1 // loop_pre_header
      _
    $region3: #{encoder_block_forward.8} parent=1 // loop_header
      %s11 = sphi 0, %s15
      %p12 = scmp.ge.s32.totalorder %s11, 6
      %s21 = sphi 0, %s23
      %s24 = sphi 0, %s21
      %s25 = sphi 0, %s24
      %s41 = sphi 0, %s25
      %s45 = sphi 0, %s45
      %s47 = sphi 0, %s45
      %s48 = sphi 0, %s47
      %s62 = sphi 0, %s48
      %s68 = sphi 0, %s70
      %s71 = sphi 0, %s68
      %s72 = sphi 0, %s71
      %s88 = sphi 0, %s72
      %s92 = sphi 0, %s92
      %s94 = sphi 0, %s92
      %s95 = sphi 0, %s94
      %s109 = sphi 0, %s95
      %s113 = sphi 0, %s113
      %s115 = sphi 0, %s113
      %s116 = sphi 0, %s115
      %s130 = sphi 0, %s116
    $region4: #{encoder_block_forward.8} parent=1 // loop_header_branch
      %14 = sbr.rel (%p12) target = $region8
    $region5: #{encoder_block_forward.8} parent=1 // loop_body
      %s16 = ssub.s32 %s11, 1
      %s17 = ssub.s32 %s11, 2
      %s18 = sadd.s32 %s11, 1
      %s19 = ssub.s32 %s11, %s18
      %p20 = scmp.eq.s32.totalorder %s19, 0
      %s22 = sadd.s32 %s21, 1
      %s23 = scalar_select %p20, %s21, %s22
      %p26 = pneg %p20
      %p27 = scmp.eq.s32.totalorder %s11, 3
      %p28 = por %p26, %p27
      %p29 = scmp.ne.s32.totalorder %s21, %s24
      %p30 = scmp.eq.s32.totalorder %s11, 0
      %p31 = por %p29, %p30
      %p32 = scmp.ne.s32.totalorder %s21, %s24
      %p33 = scmp.eq.s32.totalorder %s16, 3
      %p34 = por %p32, %p33
      %p35 = scmp.ne.s32.totalorder %s24, %s25
      %p36 = scmp.eq.s32.totalorder %s16, 0
      %p37 = por %p35, %p36
      %p38 = scmp.ne.s32.totalorder %s24, %s25
      %p39 = scmp.eq.s32.totalorder %s17, 3
      %p40 = por %p38, %p39
      %p42 = scmp.ne.s32.totalorder %s25, %s41
      %p43 = scmp.eq.s32.totalorder %s17, 0
      %p44 = por %p42, %p43
      %s46 = sadd.s32 %s45, 1
      %p49 = scmp.eq.s32.totalorder %s11, 3
      %p50 = scmp.ne.s32.totalorder %s45, %s47
      %p51 = scmp.eq.s32.totalorder %s11, 0
      %p52 = por %p50, %p51
      %p53 = scmp.ne.s32.totalorder %s45, %s47
      %p54 = scmp.eq.s32.totalorder %s16, 3
      %p55 = por %p53, %p54
      %p56 = scmp.ne.s32.totalorder %s47, %s48
      %p57 = scmp.eq.s32.totalorder %s16, 0
      %p58 = por %p56, %p57
      %p59 = scmp.ne.s32.totalorder %s47, %s48
      %p60 = scmp.eq.s32.totalorder %s17, 3
      %p61 = por %p59, %p60
      %p63 = scmp.ne.s32.totalorder %s48, %s62
      %p64 = scmp.eq.s32.totalorder %s17, 0
      %p65 = por %p63, %p64
      %s66 = ssub.s32 %s11, %s18
      %p67 = scmp.eq.s32.totalorder %s66, 0
      %s69 = sadd.s32 %s68, 1
      %s70 = scalar_select %p67, %s68, %s69
      %p73 = pneg %p67
      %p74 = scmp.eq.s32.totalorder %s11, 3
      %p75 = por %p73, %p74
      %p76 = scmp.ne.s32.totalorder %s68, %s71
      %p77 = scmp.eq.s32.totalorder %s11, 0
      %p78 = por %p76, %p77
      %p79 = scmp.ne.s32.totalorder %s68, %s71
      %p80 = scmp.eq.s32.totalorder %s16, 3
      %p81 = por %p79, %p80
      %p82 = scmp.ne.s32.totalorder %s71, %s72
      %p83 = scmp.eq.s32.totalorder %s16, 0
      %p84 = por %p82, %p83
      %p85 = scmp.ne.s32.totalorder %s71, %s72
      %p86 = scmp.eq.s32.totalorder %s17, 3
      %p87 = por %p85, %p86
      %p89 = scmp.ne.s32.totalorder %s72, %s88
      %p90 = scmp.eq.s32.totalorder %s17, 0
      %p91 = por %p89, %p90
      %s93 = sadd.s32 %s92, 1
      %p96 = scmp.eq.s32.totalorder %s11, 3
      %p97 = scmp.ne.s32.totalorder %s92, %s94
      %p98 = scmp.eq.s32.totalorder %s11, 0
      %p99 = por %p97, %p98
      %p100 = scmp.ne.s32.totalorder %s92, %s94
      %p101 = scmp.eq.s32.totalorder %s16, 3
      %p102 = por %p100, %p101
      %p103 = scmp.ne.s32.totalorder %s94, %s95
      %p104 = scmp.eq.s32.totalorder %s16, 0
      %p105 = por %p103, %p104
      %p106 = scmp.ne.s32.totalorder %s94, %s95
      %p107 = scmp.eq.s32.totalorder %s17, 3
      %p108 = por %p106, %p107
      %p110 = scmp.ne.s32.totalorder %s95, %s109
      %p111 = scmp.eq.s32.totalorder %s17, 0
      %p112 = por %p110, %p111
      %s114 = sadd.s32 %s113, 1
      %p117 = scmp.eq.s32.totalorder %s11, 3
      %p118 = scmp.ne.s32.totalorder %s113, %s115
      %p119 = scmp.eq.s32.totalorder %s11, 0
      %p120 = por %p118, %p119
      %p121 = scmp.ne.s32.totalorder %s113, %s115
      %p122 = scmp.eq.s32.totalorder %s16, 3
      %p123 = por %p121, %p122
      %p124 = scmp.ne.s32.totalorder %s115, %s116
      %p125 = scmp.eq.s32.totalorder %s16, 0
      %p126 = por %p124, %p125
      %p127 = scmp.ne.s32.totalorder %s115, %s116
      %p128 = scmp.eq.s32.totalorder %s17, 3
      %p129 = por %p127, %p128
      %p131 = scmp.ne.s32.totalorder %s116, %s130
      %p132 = scmp.eq.s32.totalorder %s17, 0
      %p133 = por %p131, %p132
      %p134 = scmp.le.s32.totalorder 1, %s11
      %p135 = scmp.lt.s32.totalorder %s11, 5
      %p136 = pnand %p134, %p135
      %p137 = pneg %p136
      // Predicated region
      $region9: #{encoder_block_forward.8} parent=5 // pred_check
        _
      $region10: #{encoder_block_forward.8} parent=5 // pred_check_branch
        %139 = sbr.rel (%p136) target = $region12
      $region11: #{encoder_block_forward.8} parent=5 // pred_region
        %s140 = ssub.s32 %s11, 1
        // Predicated region
        $region13: #{encoder_block_forward.8} parent=11 // pred_check
          %p141 = pneg %p58
        $region14: #{encoder_block_forward.8} parent=11 // pred_check_branch
          %143 = sbr.rel (%p141) target = $region16
        $region15: #{encoder_block_forward.8} parent=11 // pred_region
          _
        $region16: #{encoder_block_forward.8} parent=11 // pred_fallthru
          _
      $region12: #{encoder_block_forward.8} parent=5 // pred_fallthru
        _
      %p144 = scmp.lt.s32.totalorder %s11, 4
      // Predicated region
      $region17: #{encoder_block_forward.8} parent=5 // pred_check
        %p145 = pneg %p144
      $region18: #{encoder_block_forward.8} parent=5 // pred_check_branch
        %147 = sbr.rel (%p145) target = $region20
      $region19: #{encoder_block_forward.8} parent=5 // pred_region
        // Predicated region
        $region21: #{encoder_block_forward.8} parent=19 // pred_check
          %p148 = pneg %p31
        $region22: #{encoder_block_forward.8} parent=19 // pred_check_branch
          %150 = sbr.rel (%p148) target = $region24
        $region23: #{encoder_block_forward.8} parent=19 // pred_region
          %s151 = sand.u32 %s21, 1
          %s152 = sand.u32 %s21, 1
          %s153 = smul.addr %s152, 20
          %s154 = scalar_lea.vmem [#allocation2], %s153
          %s155 = smul.addr %s11, 4
          %s156 = scalar_lea.vmem %s0, %s155
          // Predicated region
          $region25: #{encoder_block_forward.8} parent=23 // pred_check
            _
          $region26: #{encoder_block_forward.8} parent=23 // pred_check_branch
            %158 = sbr.rel (0) target = $region28
          $region27: #{encoder_block_forward.8} parent=23 // pred_region
            // Predicated region
            $region29: #{encoder_block_forward.8} parent=27 // pred_check
              _
            $region30: #{encoder_block_forward.8} parent=27 // pred_check_branch
              %160 = sbr.rel target = $region32
            $region31: #{encoder_block_forward.8} parent=27 // pred_region
              // Predicated region
              $region44: #{encoder_block_forward.8} parent=31 // pred_check
                _
              $region45: #{encoder_block_forward.8} parent=31 // pred_check_branch
                %184 = sbr.rel (0) target = $region47
              $region46: #{encoder_block_forward.8} parent=31 // pred_region
                loop: start=0, step=1, limit=1
                $region48: #{encoder_block_forward.8} parent=46 // loop_pre_header
                  _
                $region49: #{encoder_block_forward.8} parent=46 // loop_header
                  %s186 = sphi 0, %s190
                  %p187 = scmp.ge.s32.totalorder %s186, 1
                  %s191 = sphi %s156, %s156
                  %s192 = sphi %s154, %s154
                $region50: #{encoder_block_forward.8} parent=46 // loop_header_branch
                  %189 = sbr.rel (%p187) target = $region54
                $region51: #{encoder_block_forward.8} parent=46 // loop_body
                  _
                $region52: #{encoder_block_forward.8} parent=46 // loop_footer
                  %s190 = sadd.s32 1, %s186
                $region53: #{encoder_block_forward.8} parent=46 // loop_footer_branch
                  %185 = sbr.rel target = $region49
                $region54: #{encoder_block_forward.8} parent=46 // loop_exit
                  _
                %s194 = ssub.s32 16, 1
                loop: start=0, step=1, limit=1
                $region55: #{encoder_block_forward.8} parent=46 // loop_pre_header
                  _
                $region56: #{encoder_block_forward.8} parent=46 // loop_header
                  %s196 = sphi 0, %s200
                  %p197 = scmp.ge.s32.totalorder %s196, 1
                  %s201 = sphi %s156, %s156
                  %s202 = sphi %s154, %s154
                $region57: #{encoder_block_forward.8} parent=46 // loop_header_branch
                  %199 = sbr.rel (%p197) target = $region61
                $region58: #{encoder_block_forward.8} parent=46 // loop_body
                  %v203 = vld [vmem:[%s201] sm:%s194]
                  %204 = vst [vmem:[%s202] sm:%s194] %v203
                  %v205 = vld [vmem:[%s201 + $0x10] sm:%s194]
                  %206 = vst [vmem:[%s202 + $0x4] sm:%s194] %v205
                  %v207 = vld [vmem:[%s201 + $0x20] sm:%s194]
                  %208 = vst [vmem:[%s202 + $0x8] sm:%s194] %v207
                  %v209 = vld [vmem:[%s201 + $0x30] sm:%s194]
                  %210 = vst [vmem:[%s202 + $0xc] sm:%s194] %v209
                  %v211 = vld [vmem:[%s201 + $0x40] sm:%s194]
                  %212 = vst [vmem:[%s202 + $0x10] sm:%s194] %v211
                $region59: #{encoder_block_forward.8} parent=46 // loop_footer
                  %s200 = sadd.s32 1, %s196
                $region60: #{encoder_block_forward.8} parent=46 // loop_footer_branch
                  %195 = sbr.rel target = $region56
                $region61: #{encoder_block_forward.8} parent=46 // loop_exit
                  _
              $region47: #{encoder_block_forward.8} parent=31 // pred_fallthru
                _
            $region32: #{encoder_block_forward.8} parent=27 // pred_fallthru
              _
            // Predicated region
            $region33: #{encoder_block_forward.8} parent=27 // pred_check
              _
            $region34: #{encoder_block_forward.8} parent=27 // pred_check_branch
              %162 = sbr.rel (0) target = $region36
            $region35: #{encoder_block_forward.8} parent=27 // pred_region
              %s164 = ssub.s32 16, 1
              loop: start=0, step=1, limit=1
              $region37: #{encoder_block_forward.8} parent=35 // loop_pre_header
                _
              $region38: #{encoder_block_forward.8} parent=35 // loop_header
                %s166 = sphi 0, %s170
                %p167 = scmp.ge.s32.totalorder %s166, 1
                %s171 = sphi %s156, %s156
                %s172 = sphi %s154, %s154
              $region39: #{encoder_block_forward.8} parent=35 // loop_header_branch
                %169 = sbr.rel (%p167) target = $region43
              $region40: #{encoder_block_forward.8} parent=35 // loop_body
                %v173 = vld [vmem:[%s171] sm:%s164]
                %174 = vst [vmem:[%s172] sm:%s164] %v173
                %v175 = vld [vmem:[%s171 + $0x10] sm:%s164]
                %176 = vst [vmem:[%s172 + $0x4] sm:%s164] %v175
                %v177 = vld [vmem:[%s171 + $0x20] sm:%s164]
                %178 = vst [vmem:[%s172 + $0x8] sm:%s164] %v177
                %v179 = vld [vmem:[%s171 + $0x30] sm:%s164]
                %180 = vst [vmem:[%s172 + $0xc] sm:%s164] %v179
                %v181 = vld [vmem:[%s171 + $0x40] sm:%s164]
                %182 = vst [vmem:[%s172 + $0x10] sm:%s164] %v181
              $region41: #{encoder_block_forward.8} parent=35 // loop_footer
                %s170 = sadd.s32 1, %s166
              $region42: #{encoder_block_forward.8} parent=35 // loop_footer_branch
                %165 = sbr.rel target = $region38
              $region43: #{encoder_block_forward.8} parent=35 // loop_exit
                _
            $region36: #{encoder_block_forward.8} parent=27 // pred_fallthru
              _
          $region28: #{encoder_block_forward.8} parent=23 // pred_fallthru
            _
          %213 = vnop
        $region24: #{encoder_block_forward.8} parent=19 // pred_fallthru
          _
      $region20: #{encoder_block_forward.8} parent=5 // pred_fallthru
        _
      %p214 = scmp.le.s32.totalorder 1, %s11
      %p215 = scmp.lt.s32.totalorder %s11, 5
      %p216 = pnand %p214, %p215
      %p217 = pneg %p216
      // Predicated region
      $region62: #{encoder_block_forward.8} parent=5 // pred_check
        _
      $region63: #{encoder_block_forward.8} parent=5 // pred_check_branch
        %219 = sbr.rel (%p216) target = $region65
      $region64: #{encoder_block_forward.8} parent=5 // pred_region
        %s220 = ssub.s32 %s11, 1
        %s221 = sand.u32 %s24, 1
        %s222 = sand.u32 %s24, 1
        %s223 = smul.addr %s222, 20
        %s224 = scalar_lea.vmem [#allocation2], %s223
        // Predicated region
        $region66: #{encoder_block_forward.8} parent=64 // pred_check
          %p225 = pneg %p37
        $region67: #{encoder_block_forward.8} parent=64 // pred_check_branch
          %227 = sbr.rel (%p225) target = $region69
        $region68: #{encoder_block_forward.8} parent=64 // pred_region
          _
        $region69: #{encoder_block_forward.8} parent=64 // pred_fallthru
          _
        %s228 = sand.u32 %s24, 1
        %s229 = sand.u32 %s24, 1
        %s230 = smul.addr %s229, 20
        %s231 = scalar_lea.vmem [#allocation2], %s230
        %p232 = pneg %p37
        %p233 = pneg %p34
        %p234 = pneg %p58
        %p235 = pneg %p55
        %p236 = pneg %p84
        %p237 = pneg %p81
        %p238 = scmp.lt.s32.totalorder %s16, 3
        %s239 = scalar_select %p238, %s16, 3
        %s240 = smul.addr %s239, 4
        %s241 = scalar_lea.vmem %s2, %s240
        %p242 = pneg %p105
        %p243 = pneg %p102
        %p244 = pneg %p126
        %p245 = pneg %p123
        %p246 = scmp.lt.s32.totalorder %s16, 3
        %s247 = scalar_select %p246, %s16, 3
        %s248 = smul.addr %s247, 4
        %s249 = scalar_lea.vmem %s2, %s248
        %p250 = scmp.eq.s32.totalorder %s16, 0
        // Predicated region
        $region70: #{encoder_block_forward.8} parent=64 // pred_check
          %p251 = pneg %p250
        $region71: #{encoder_block_forward.8} parent=64 // pred_check_branch
          %253 = sbr.rel (%p251) target = $region73
        $region72: #{encoder_block_forward.8} parent=64 // pred_region
          %vm254 = vcmask 3072
          %255 = vst.msk [vmem:[%s3] sm:$0xf] %vm254, 0.0
          %256 = vst.msk [vmem:[%s4] sm:$0xf] %vm254, 0.0
        $region73: #{encoder_block_forward.8} parent=64 // pred_fallthru
          _
        %v257 = vld [vmem:[%s1] sm:$0xf]
        %v258 = vld [vmem:[%s224] sm:$0xf]
        %v259 = vld [vmem:[%s224 + $0x4] sm:$0xf]
        %v260 = vld [vmem:[%s224 + $0x8] sm:$0xf]
        %v261 = vld [vmem:[%s224 + $0xc] sm:$0xf]
        %v262 = vld [vmem:[%s224 + $0x10] sm:$0x3]
        %v263 = vunpack.c.l.bf16 %v258
        %v264 = vunpack.c.l.bf16 %v259
        %v265 = vunpack.c.l.bf16 %v260
        %v266 = vunpack.c.l.bf16 %v261
        %v267 = vunpack.c.l.bf16 %v262
        %vm268 = vcmask 293888
        %v270 = vsel %vm268, %v257, 0
        %vm272 = vcmask 1043456
        %v274 = vsel %vm272, %v267, 0
        %276 = vmatpush.msra.mxu0 0.0
        %277 = vmatpush.msra.mxu0 0.0
        %278 = vmatpush.msra.mxu0 0.0
        %279 = vmatpush.msra.mxu0 0.0
        %280 = vmatpush.msra.mxu0 0.0
        %281 = vmatpush.msra.mxu0 0.0
        %282 = vmatpush.msra.mxu0 0.0
        %283 = vmatpush.msra.mxu0 0.0
        %284 = vmatpush.msra.mxu0 0.0
        %285 = vmatpush.msra.mxu0 0.0
        %286 = vmatpush.msra.mxu0 0.0
        %287 = vmatpush.msra.mxu0 %v274
        %288 = vmatpush.msra.mxu0 %v266
        %289 = vmatpush.msra.mxu0 %v265
        %290 = vmatpush.msra.mxu0 %v264
        %291 = vmatpush.msra.mxu0 %v263
        %292 = vmatmul.f32.gmra.mxu0 %v270
        %v293 = vpop.f32.mrf.mxu0
        %v294 = vadd.f32 0.0, %v293
        %295 = vdwg.mxu0
        %296 = vst [vmem:[%s249] sm:$0xf] %v294
        %v297 = vld [vmem:[%s3] sm:$0xf]
        %v298 = vsel %vm272, %v294, 0.0
        %299 = vadd.xlane.f32.xlu0 %v298
        %v300 = vpop.xlane.xlu0 %299
        %v301 = vadd.f32 %v297, %v300
        %vm302 = vcmask 3072
        %303 = vst.msk [vmem:[%s3] sm:$0xf] %vm302, %v301
        %v304 = vld [vmem:[%s4] sm:$0xf]
        %v305 = vmul.f32 %v294, %v294
        %v306 = vsel %vm272, %v305, 0.0
        %307 = vadd.xlane.f32.xlu0 %v306
        %v308 = vpop.xlane.xlu0 %307
        %v309 = vadd.f32 %v304, %v308
        %310 = vst.msk [vmem:[%s4] sm:$0xf] %vm302, %v309
        %p311 = scmp.lt.s32.totalorder %s16, 3
        %s312 = scalar_select %p311, %s16, 3
        %s313 = smul.addr %s312, 4
        %s314 = scalar_lea.vmem %s2, %s313
        // Predicated region
        $region74: #{encoder_block_forward.8} parent=64 // pred_check
          %p315 = pneg %p81
        $region75: #{encoder_block_forward.8} parent=64 // pred_check_branch
          %317 = sbr.rel (%p315) target = $region77
        $region76: #{encoder_block_forward.8} parent=64 // pred_region
          _
        $region77: #{encoder_block_forward.8} parent=64 // pred_fallthru
          _
        // Predicated region
        $region78: #{encoder_block_forward.8} parent=64 // pred_check
          %p318 = pneg %p102
        $region79: #{encoder_block_forward.8} parent=64 // pred_check_branch
          %320 = sbr.rel (%p318) target = $region81
        $region80: #{encoder_block_forward.8} parent=64 // pred_region
          _
        $region81: #{encoder_block_forward.8} parent=64 // pred_fallthru
          _
        // Predicated region
        $region82: #{encoder_block_forward.8} parent=64 // pred_check
          %p321 = pneg %p123
        $region83: #{encoder_block_forward.8} parent=64 // pred_check_branch
          %323 = sbr.rel (%p321) target = $region85
        $region84: #{encoder_block_forward.8} parent=64 // pred_region
          _
        $region85: #{encoder_block_forward.8} parent=64 // pred_fallthru
          _
        // Predicated region
        $region86: #{encoder_block_forward.8} parent=64 // pred_check
          %p324 = pneg %p102
        $region87: #{encoder_block_forward.8} parent=64 // pred_check_branch
          %326 = sbr.rel (%p324) target = $region89
        $region88: #{encoder_block_forward.8} parent=64 // pred_region
          _
        $region89: #{encoder_block_forward.8} parent=64 // pred_fallthru
          _
        // Predicated region
        $region90: #{encoder_block_forward.8} parent=64 // pred_check
          %p327 = pneg %p123
        $region91: #{encoder_block_forward.8} parent=64 // pred_check_branch
          %329 = sbr.rel (%p327) target = $region93
        $region92: #{encoder_block_forward.8} parent=64 // pred_region
          _
        $region93: #{encoder_block_forward.8} parent=64 // pred_fallthru
          _
      $region65: #{encoder_block_forward.8} parent=5 // pred_fallthru
        _
      %p330 = scmp.le.s32.totalorder 2, %s11
      // Predicated region
      $region94: #{encoder_block_forward.8} parent=5 // pred_check
        %p331 = pneg %p330
      $region95: #{encoder_block_forward.8} parent=5 // pred_check_branch
        %333 = sbr.rel (%p331) target = $region97
      $region96: #{encoder_block_forward.8} parent=5 // pred_region
        %s334 = ssub.s32 %s11, 2
        // Predicated region
        $region98: #{encoder_block_forward.8} parent=96 // pred_check
          %p335 = pneg %p87
        $region99: #{encoder_block_forward.8} parent=96 // pred_check_branch
          %337 = sbr.rel (%p335) target = $region101
        $region100: #{encoder_block_forward.8} parent=96 // pred_region
          %p338 = scmp.lt.s32.totalorder %s17, 3
          %s339 = scalar_select %p338, %s17, 3
          %s340 = smul.addr %s339, 4
          %s341 = scalar_lea.vmem %s2, %s340
        $region101: #{encoder_block_forward.8} parent=96 // pred_fallthru
          _
      $region97: #{encoder_block_forward.8} parent=5 // pred_fallthru
        _
    $region6: #{encoder_block_forward.8} parent=1 // loop_footer
      %s15 = sadd.s32 1, %s11
    $region7: #{encoder_block_forward.8} parent=1 // loop_footer_branch
      %10 = sbr.rel target = $region3
    $region8: #{encoder_block_forward.8} parent=1 // loop_exit
      _

// kernel: encoder_block_forward.11
$region0: #{encoder_block_forward.11}
  #allocation0 [shape = 'u32[]', space=smem, size = 0x4, offset = 0x4, fixed_abs, tag = 'smem constant byte address 0x4 - core index']
  #allocation1 [shape = 'u32[72,128]{1,0:T(1,128)}', space=vmem, size = 0x9000, scoped, tag = 'internal scratch']
  %s0 = inlined_call_operand.vmem [shape: f32[8,128], index: 0, kind: input, shape index: {}]
  %s1 = inlined_call_operand.vmem [shape: f32[8,1], index: 1, kind: input, shape index: {}]
  %s2 = inlined_call_operand.vmem [shape: f32[8,1], index: 2, kind: input, shape index: {}]
  %s3 = inlined_call_operand.vmem [shape: f32[8,128], index: 3, kind: output, shape index: {}]
  %s4 = sld [smem:[#allocation0]]
  $region22: #{encoder_block_forward.11} parent=0
    _
  %s6 = ssub.s32 1, %s4
  %s7 = scalar_select 0, %s6, %s4
  // Predicated region
  $region2: #{encoder_block_forward.11} parent=0 // pred_check
    _
  $region3: #{encoder_block_forward.11} parent=0 // pred_check_branch
    %9 = sbr.rel (0) target = $region5
  $region4: #{encoder_block_forward.11} parent=0 // pred_region
    _
  $region5: #{encoder_block_forward.11} parent=0 // pred_fallthru
    _
  // Predicated region
  $region6: #{encoder_block_forward.11} parent=0 // pred_check
    _
  $region7: #{encoder_block_forward.11} parent=0 // pred_check_branch
    %11 = sbr.rel (0) target = $region9
  $region8: #{encoder_block_forward.11} parent=0 // pred_region
    _
  $region9: #{encoder_block_forward.11} parent=0 // pred_fallthru
    _
  // Predicated region
  $region10: #{encoder_block_forward.11} parent=0 // pred_check
    _
  $region11: #{encoder_block_forward.11} parent=0 // pred_check_branch
    %13 = sbr.rel (0) target = $region13
  $region12: #{encoder_block_forward.11} parent=0 // pred_region
    _
  $region13: #{encoder_block_forward.11} parent=0 // pred_fallthru
    _
  %v14 = vld [vmem:[%s0] sm:$0xff]
  %v15 = vld [vmem:[%s1] sm:$0xff]
  %17 = vset.pattern.permute.xlu0 0
  %18 = vperm.xlu0 %17, %v15
  %v19 = vpop.permute.xlu0 %18
  %v21 = vmul.f32 %v14, %v19
  %v22 = vld [vmem:[%s2] sm:$0xff]
  %24 = vset.pattern.permute.xlu0 0
  %25 = vperm.xlu0 %24, %v22
  %v26 = vpop.permute.xlu0 %25
  %v28 = vadd.f32 %v21, %v26
  %v29 = vxor.u32 %v28, 2147483648
  %v30 = vmul.f32 %v29, 1.442695
  %v31 = vpow.pop %v30
  %v32 = vadd.f32 %v31, 1.0
  %v33 = vrcp.pop %v32
  %v34 = vmul.f32 %v32, %v33
  %v35 = vsub.f32 1.0, %v34
  %v36 = vmul.f32 %v33, %v35
  %v37 = vadd.f32 %v33, %v36
  %vm38 = vweird.f32 %v32
  %vm39 = vweird.f32 %v33
  %vm40 = vmor %vm38, %vm39
  %v41 = vsel %vm40, %v33, %v37
  %v42 = vand.u32 2147483647, %v32
  %vm43 = vcmp.eq.f32.partialorder %v42, 8.507059e+37
  %v44 = vand.u32 %v32, 2147483648
  %v45 = vor.u32 1.1754944e-38, %v44
  %v46 = vsel %vm43, %v45, %v41
  %v47 = vmul.f32 1.0, %v46
  %v48 = vmul.f32 %v28, %v47
  %49 = vst [vmem:[%s3] sm:$0xff] %v48
  // Predicated region
  $region14: #{encoder_block_forward.11} parent=0 // pred_check
    _
  $region15: #{encoder_block_forward.11} parent=0 // pred_check_branch
    %51 = sbr.rel (0) target = $region17
  $region16: #{encoder_block_forward.11} parent=0 // pred_region
    _
  $region17: #{encoder_block_forward.11} parent=0 // pred_fallthru
    _
  // Predicated region
  $region18: #{encoder_block_forward.11} parent=0 // pred_check
    _
  $region19: #{encoder_block_forward.11} parent=0 // pred_check_branch
    %53 = sbr.rel (0) target = $region21
  $region20: #{encoder_block_forward.11} parent=0 // pred_region
    _
  $region21: #{encoder_block_forward.11} parent=0 // pred_fallthru
    _

// kernel: encoder_block_forward.10
$region0: #{encoder_block_forward.10}
  #allocation0 [shape = 'u32[]', space=smem, size = 0x4, offset = 0x4, fixed_abs, tag = 'smem constant byte address 0x4 - core index']
  #allocation1 [shape = 'u32[72,128]{1,0:T(1,128)}', space=vmem, size = 0x9000, scoped, tag = 'internal scratch']
  %s0 = inlined_call_operand.vmem [shape: bf16[36,128], index: 0, kind: input, shape index: {}]
  %s1 = inlined_call_operand.vmem [shape: f32[8,36], index: 1, kind: input, shape index: {}]
  %s2 = inlined_call_operand.vmem [shape: f32[8,128], index: 2, kind: output, shape index: {0}]
  %s3 = inlined_call_operand.vmem [shape: f32[8,1], index: 3, kind: output, shape index: {1}]
  %s4 = inlined_call_operand.vmem [shape: f32[8,1], index: 4, kind: output, shape index: {2}]
  %5 = xla_tuple %s2, %s3, %s4
  %s6 = sld [smem:[#allocation0]]
  $region38: #{encoder_block_forward.10} parent=0
    _
  %s8 = ssub.s32 1, %s6
  %s9 = scalar_select 0, %s8, %s6
  // Predicated region
  $region2: #{encoder_block_forward.10} parent=0 // pred_check
    _
  $region3: #{encoder_block_forward.10} parent=0 // pred_check_branch
    %11 = sbr.rel (0) target = $region5
  $region4: #{encoder_block_forward.10} parent=0 // pred_region
    _
  $region5: #{encoder_block_forward.10} parent=0 // pred_fallthru
    _
  // Predicated region
  $region6: #{encoder_block_forward.10} parent=0 // pred_check
    _
  $region7: #{encoder_block_forward.10} parent=0 // pred_check_branch
    %13 = sbr.rel (0) target = $region9
  $region8: #{encoder_block_forward.10} parent=0 // pred_region
    _
  $region9: #{encoder_block_forward.10} parent=0 // pred_fallthru
    _
  %p14 = scmp.eq.s32.totalorder 0, 0
  // Predicated region
  $region10: #{encoder_block_forward.10} parent=0 // pred_check
    %p15 = pneg %p14
  $region11: #{encoder_block_forward.10} parent=0 // pred_check_branch
    %17 = sbr.rel (%p15) target = $region13
  $region12: #{encoder_block_forward.10} parent=0 // pred_region
    %vm18 = vcmask 7168
    %19 = vst.msk [vmem:[%s3] sm:$0xff] %vm18, 0.0
    %20 = vst.msk [vmem:[%s4] sm:$0xff] %vm18, 0.0
  $region13: #{encoder_block_forward.10} parent=0 // pred_fallthru
    _
  %v21 = vld [vmem:[%s1] sm:$0xff]
  %v22 = vld [vmem:[%s0] sm:$0xf]
  %v23 = vld [vmem:[%s0 + $0x4] sm:$0xf]
  %v24 = vld [vmem:[%s0 + $0x8] sm:$0xf]
  %v25 = vld [vmem:[%s0 + $0xc] sm:$0xf]
  %v26 = vld [vmem:[%s0 + $0x10] sm:$0x3]
  %v27 = vunpack.c.l.bf16 %v22
  %v28 = vunpack.c.l.bf16 %v23
  %v29 = vunpack.c.l.bf16 %v24
  %v30 = vunpack.c.l.bf16 %v25
  %v31 = vunpack.c.l.bf16 %v26
  %vm32 = vcmask 293888
  %v34 = vsel %vm32, %v21, 0
  %vm36 = vcmask 1043456
  %v38 = vsel %vm36, %v31, 0
  %40 = vmatpush.msra.mxu0 0.0
  %41 = vmatpush.msra.mxu0 0.0
  %42 = vmatpush.msra.mxu0 0.0
  %43 = vmatpush.msra.mxu0 0.0
  %44 = vmatpush.msra.mxu0 0.0
  %45 = vmatpush.msra.mxu0 0.0
  %46 = vmatpush.msra.mxu0 0.0
  %47 = vmatpush.msra.mxu0 0.0
  %48 = vmatpush.msra.mxu0 0.0
  %49 = vmatpush.msra.mxu0 0.0
  %50 = vmatpush.msra.mxu0 0.0
  %51 = vmatpush.msra.mxu0 %v38
  %52 = vmatpush.msra.mxu0 %v30
  %53 = vmatpush.msra.mxu0 %v29
  %54 = vmatpush.msra.mxu0 %v28
  %55 = vmatpush.msra.mxu0 %v27
  %56 = vmatmul.f32.gmra.mxu0 %v34
  %v57 = vpop.f32.mrf.mxu0
  %v58 = vadd.f32 0.0, %v57
  %59 = vdwg.mxu0
  %60 = vst [vmem:[%s2] sm:$0xff] %v58
  %v61 = vld [vmem:[%s3] sm:$0xff]
  %62 = vadd.xlane.f32.xlu0 %v58
  %v63 = vpop.xlane.xlu0 %62
  %v64 = vadd.f32 %v61, %v63
  %vm65 = vcmask 7168
  %66 = vst.msk [vmem:[%s3] sm:$0xff] %vm65, %v64
  %v67 = vld [vmem:[%s4] sm:$0xff]
  %v68 = vmul.f32 %v58, %v58
  %69 = vadd.xlane.f32.xlu0 %v68
  %v70 = vpop.xlane.xlu0 %69
  %v71 = vadd.f32 %v67, %v70
  %72 = vst.msk [vmem:[%s4] sm:$0xff] %vm65, %v71
  // Predicated region
  $region14: #{encoder_block_forward.10} parent=0 // pred_check
    _
  $region15: #{encoder_block_forward.10} parent=0 // pred_check_branch
    %74 = sbr.rel (0) target = $region17
  $region16: #{encoder_block_forward.10} parent=0 // pred_region
    _
  $region17: #{encoder_block_forward.10} parent=0 // pred_fallthru
    _
  // Predicated region
  $region18: #{encoder_block_forward.10} parent=0 // pred_check
    _
  $region19: #{encoder_block_forward.10} parent=0 // pred_check_branch
    %76 = sbr.rel (0) target = $region21
  $region20: #{encoder_block_forward.10} parent=0 // pred_region
    _
  $region21: #{encoder_block_forward.10} parent=0 // pred_fallthru
    _
  // Predicated region
  $region22: #{encoder_block_forward.10} parent=0 // pred_check
    _
  $region23: #{encoder_block_forward.10} parent=0 // pred_check_branch
    %78 = sbr.rel (0) target = $region25
  $region24: #{encoder_block_forward.10} parent=0 // pred_region
    _
  $region25: #{encoder_block_forward.10} parent=0 // pred_fallthru
    _
  // Predicated region
  $region26: #{encoder_block_forward.10} parent=0 // pred_check
    _
  $region27: #{encoder_block_forward.10} parent=0 // pred_check_branch
    %80 = sbr.rel (0) target = $region29
  $region28: #{encoder_block_forward.10} parent=0 // pred_region
    _
  $region29: #{encoder_block_forward.10} parent=0 // pred_fallthru
    _
  // Predicated region
  $region30: #{encoder_block_forward.10} parent=0 // pred_check
    _
  $region31: #{encoder_block_forward.10} parent=0 // pred_check_branch
    %82 = sbr.rel (0) target = $region33
  $region32: #{encoder_block_forward.10} parent=0 // pred_region
    _
  $region33: #{encoder_block_forward.10} parent=0 // pred_fallthru
    _
  // Predicated region
  $region34: #{encoder_block_forward.10} parent=0 // pred_check
    _
  $region35: #{encoder_block_forward.10} parent=0 // pred_check_branch
    %84 = sbr.rel (0) target = $region37
  $region36: #{encoder_block_forward.10} parent=0 // pred_region
    _
  $region37: #{encoder_block_forward.10} parent=0 // pred_fallthru
    _

// kernel: encoder_block_forward.13
$region0: #{encoder_block_forward.13}
  #allocation0 [shape = 'u32[]', space=smem, size = 0x4, offset = 0x4, fixed_abs, tag = 'smem constant byte address 0x4 - core index']
  #allocation1 [shape = 'u32[72,128]{1,0:T(1,128)}', space=vmem, size = 0x9000, scoped, tag = 'internal scratch']
  %s0 = inlined_call_operand.vmem [shape: f32[8,128], index: 0, kind: input, shape index: {}]
  %s1 = inlined_call_operand.vmem [shape: f32[8,1], index: 1, kind: input, shape index: {}]
  %s2 = inlined_call_operand.vmem [shape: f32[8,1], index: 2, kind: input, shape index: {}]
  %s3 = inlined_call_operand.vmem [shape: bf16[8,128], index: 3, kind: output, shape index: {}]
  %s4 = sld [smem:[#allocation0]]
  $region22: #{encoder_block_forward.13} parent=0
    _
  %s6 = ssub.s32 1, %s4
  %s7 = scalar_select 0, %s6, %s4
  // Predicated region
  $region2: #{encoder_block_forward.13} parent=0 // pred_check
    _
  $region3: #{encoder_block_forward.13} parent=0 // pred_check_branch
    %9 = sbr.rel (0) target = $region5
  $region4: #{encoder_block_forward.13} parent=0 // pred_region
    _
  $region5: #{encoder_block_forward.13} parent=0 // pred_fallthru
    _
  // Predicated region
  $region6: #{encoder_block_forward.13} parent=0 // pred_check
    _
  $region7: #{encoder_block_forward.13} parent=0 // pred_check_branch
    %11 = sbr.rel (0) target = $region9
  $region8: #{encoder_block_forward.13} parent=0 // pred_region
    _
  $region9: #{encoder_block_forward.13} parent=0 // pred_fallthru
    _
  // Predicated region
  $region10: #{encoder_block_forward.13} parent=0 // pred_check
    _
  $region11: #{encoder_block_forward.13} parent=0 // pred_check_branch
    %13 = sbr.rel (0) target = $region13
  $region12: #{encoder_block_forward.13} parent=0 // pred_region
    _
  $region13: #{encoder_block_forward.13} parent=0 // pred_fallthru
    _
  %v14 = vld [vmem:[%s0] sm:$0xff]
  %v15 = vld [vmem:[%s1] sm:$0xff]
  %17 = vset.pattern.permute.xlu0 0
  %18 = vperm.xlu0 %17, %v15
  %v19 = vpop.permute.xlu0 %18
  %v21 = vmul.f32 %v14, %v19
  %v22 = vld [vmem:[%s2] sm:$0xff]
  %24 = vset.pattern.permute.xlu0 0
  %25 = vperm.xlu0 %24, %v22
  %v26 = vpop.permute.xlu0 %25
  %v28 = vadd.f32 %v21, %v26
  %v29 = vxor.u32 %v28, 2147483648
  %v30 = vmul.f32 %v29, 1.442695
  %v31 = vpow.pop %v30
  %v32 = vadd.f32 %v31, 1.0
  %v33 = vrcp.pop %v32
  %v34 = vmul.f32 %v32, %v33
  %v35 = vsub.f32 1.0, %v34
  %v36 = vmul.f32 %v33, %v35
  %v37 = vadd.f32 %v33, %v36
  %vm38 = vweird.f32 %v32
  %vm39 = vweird.f32 %v33
  %vm40 = vmor %vm38, %vm39
  %v41 = vsel %vm40, %v33, %v37
  %v42 = vand.u32 2147483647, %v32
  %vm43 = vcmp.eq.f32.partialorder %v42, 8.507059e+37
  %v44 = vand.u32 %v32, 2147483648
  %v45 = vor.u32 1.1754944e-38, %v44
  %v46 = vsel %vm43, %v45, %v41
  %v47 = vmul.f32 1.0, %v46
  %v48 = vmul.f32 %v28, %v47
  %v49 = vpack.c.bf16 %v48, %v48
  %50 = vst [vmem:[%s3] sm:$0xf] %v49
  // Predicated region
  $region14: #{encoder_block_forward.13} parent=0 // pred_check
    _
  $region15: #{encoder_block_forward.13} parent=0 // pred_check_branch
    %52 = sbr.rel (0) target = $region17
  $region16: #{encoder_block_forward.13} parent=0 // pred_region
    _
  $region17: #{encoder_block_forward.13} parent=0 // pred_fallthru
    _
  // Predicated region
  $region18: #{encoder_block_forward.13} parent=0 // pred_check
    _
  $region19: #{encoder_block_forward.13} parent=0 // pred_check_branch
    %54 = sbr.rel (0) target = $region21
  $region20: #{encoder_block_forward.13} parent=0 // pred_region
    _
  $region21: #{encoder_block_forward.13} parent=0 // pred_fallthru
    _

// kernel: encoder_block_forward.12
$region0: #{encoder_block_forward.12}
  #allocation0 [shape = 'u32[]', space=smem, size = 0x4, offset = 0x4, fixed_abs, tag = 'smem constant byte address 0x4 - core index']
  #allocation1 [shape = 'u32[72,128]{1,0:T(1,128)}', space=vmem, size = 0x9000, scoped, tag = 'internal scratch']
  %s0 = inlined_call_operand.vmem [shape: bf16[72,128], index: 0, kind: input, shape index: {}]
  %s1 = inlined_call_operand.vmem [shape: f32[8,72], index: 1, kind: input, shape index: {}]
  %s2 = inlined_call_operand.vmem [shape: f32[8,128], index: 2, kind: output, shape index: {0}]
  %s3 = inlined_call_operand.vmem [shape: f32[8,1], index: 3, kind: output, shape index: {1}]
  %s4 = inlined_call_operand.vmem [shape: f32[8,1], index: 4, kind: output, shape index: {2}]
  %5 = xla_tuple %s2, %s3, %s4
  %s6 = sld [smem:[#allocation0]]
  $region38: #{encoder_block_forward.12} parent=0
    _
  %s8 = ssub.s32 1, %s6
  %s9 = scalar_select 0, %s8, %s6
  // Predicated region
  $region2: #{encoder_block_forward.12} parent=0 // pred_check
    _
  $region3: #{encoder_block_forward.12} parent=0 // pred_check_branch
    %11 = sbr.rel (0) target = $region5
  $region4: #{encoder_block_forward.12} parent=0 // pred_region
    _
  $region5: #{encoder_block_forward.12} parent=0 // pred_fallthru
    _
  // Predicated region
  $region6: #{encoder_block_forward.12} parent=0 // pred_check
    _
  $region7: #{encoder_block_forward.12} parent=0 // pred_check_branch
    %13 = sbr.rel (0) target = $region9
  $region8: #{encoder_block_forward.12} parent=0 // pred_region
    _
  $region9: #{encoder_block_forward.12} parent=0 // pred_fallthru
    _
  %p14 = scmp.eq.s32.totalorder 0, 0
  // Predicated region
  $region10: #{encoder_block_forward.12} parent=0 // pred_check
    %p15 = pneg %p14
  $region11: #{encoder_block_forward.12} parent=0 // pred_check_branch
    %17 = sbr.rel (%p15) target = $region13
  $region12: #{encoder_block_forward.12} parent=0 // pred_region
    %vm18 = vcmask 7168
    %19 = vst.msk [vmem:[%s3] sm:$0xff] %vm18, 0.0
    %20 = vst.msk [vmem:[%s4] sm:$0xff] %vm18, 0.0
  $region13: #{encoder_block_forward.12} parent=0 // pred_fallthru
    _
  %v21 = vld [vmem:[%s1] sm:$0xff]
  %v22 = vld [vmem:[%s0] sm:$0xf]
  %v23 = vld [vmem:[%s0 + $0x4] sm:$0xf]
  %v24 = vld [vmem:[%s0 + $0x8] sm:$0xf]
  %v25 = vld [vmem:[%s0 + $0xc] sm:$0xf]
  %v26 = vld [vmem:[%s0 + $0x10] sm:$0xf]
  %v27 = vld [vmem:[%s0 + $0x14] sm:$0xf]
  %v28 = vld [vmem:[%s0 + $0x18] sm:$0xf]
  %v29 = vld [vmem:[%s0 + $0x1c] sm:$0xf]
  %v30 = vld [vmem:[%s0 + $0x20] sm:$0xf]
  %v31 = vunpack.c.l.bf16 %v22
  %v32 = vunpack.c.l.bf16 %v23
  %v33 = vunpack.c.l.bf16 %v24
  %v34 = vunpack.c.l.bf16 %v25
  %v35 = vunpack.c.l.bf16 %v26
  %v36 = vunpack.c.l.bf16 %v27
  %v37 = vunpack.c.l.bf16 %v28
  %v38 = vunpack.c.l.bf16 %v29
  %v39 = vunpack.c.l.bf16 %v30
  %vm40 = vcmask 588800
  %v42 = vsel %vm40, %v21, 0
  %44 = vmatpush.msra.mxu0 0.0
  %45 = vmatpush.msra.mxu0 0.0
  %46 = vmatpush.msra.mxu0 0.0
  %47 = vmatpush.msra.mxu0 0.0
  %48 = vmatpush.msra.mxu0 0.0
  %49 = vmatpush.msra.mxu0 0.0
  %50 = vmatpush.msra.mxu0 0.0
  %51 = vmatpush.msra.mxu0 %v39
  %52 = vmatpush.msra.mxu0 %v38
  %53 = vmatpush.msra.mxu0 %v37
  %54 = vmatpush.msra.mxu0 %v36
  %55 = vmatpush.msra.mxu0 %v35
  %56 = vmatpush.msra.mxu0 %v34
  %57 = vmatpush.msra.mxu0 %v33
  %58 = vmatpush.msra.mxu0 %v32
  %59 = vmatpush.msra.mxu0 %v31
  %60 = vmatmul.f32.gmra.mxu0 %v42
  %v61 = vpop.f32.mrf.mxu0
  %v62 = vadd.f32 0.0, %v61
  %63 = vdwg.mxu0
  %64 = vst [vmem:[%s2] sm:$0xff] %v62
  %v65 = vld [vmem:[%s3] sm:$0xff]
  %66 = vadd.xlane.f32.xlu0 %v62
  %v67 = vpop.xlane.xlu0 %66
  %v68 = vadd.f32 %v65, %v67
  %vm69 = vcmask 7168
  %70 = vst.msk [vmem:[%s3] sm:$0xff] %vm69, %v68
  %v71 = vld [vmem:[%s4] sm:$0xff]
  %v72 = vmul.f32 %v62, %v62
  %73 = vadd.xlane.f32.xlu0 %v72
  %v74 = vpop.xlane.xlu0 %73
  %v75 = vadd.f32 %v71, %v74
  %76 = vst.msk [vmem:[%s4] sm:$0xff] %vm69, %v75
  // Predicated region
  $region14: #{encoder_block_forward.12} parent=0 // pred_check
    _
  $region15: #{encoder_block_forward.12} parent=0 // pred_check_branch
    %78 = sbr.rel (0) target = $region17
  $region16: #{encoder_block_forward.12} parent=0 // pred_region
    _
  $region17: #{encoder_block_forward.12} parent=0 // pred_fallthru
    _
  // Predicated region
  $region18: #{encoder_block_forward.12} parent=0 // pred_check
    _
  $region19: #{encoder_block_forward.12} parent=0 // pred_check_branch
    %80 = sbr.rel (0) target = $region21
  $region20: #{encoder_block_forward.12} parent=0 // pred_region
    _
  $region21: #{encoder_block_forward.12} parent=0 // pred_fallthru
    _
  // Predicated region
  $region22: #{encoder_block_forward.12} parent=0 // pred_check
    _
  $region23: #{encoder_block_forward.12} parent=0 // pred_check_branch
    %82 = sbr.rel (0) target = $region25
  $region24: #{encoder_block_forward.12} parent=0 // pred_region
    _
  $region25: #{encoder_block_forward.12} parent=0 // pred_fallthru
    _
  // Predicated region
  $region26: #{encoder_block_forward.12} parent=0 // pred_check
    _
  $region27: #{encoder_block_forward.12} parent=0 // pred_check_branch
    %84 = sbr.rel (0) target = $region29
  $region28: #{encoder_block_forward.12} parent=0 // pred_region
    _
  $region29: #{encoder_block_forward.12} parent=0 // pred_fallthru
    _
  // Predicated region
  $region30: #{encoder_block_forward.12} parent=0 // pred_check
    _
  $region31: #{encoder_block_forward.12} parent=0 // pred_check_branch
    %86 = sbr.rel (0) target = $region33
  $region32: #{encoder_block_forward.12} parent=0 // pred_region
    _
  $region33: #{encoder_block_forward.12} parent=0 // pred_fallthru
    _
  // Predicated region
  $region34: #{encoder_block_forward.12} parent=0 // pred_check
    _
  $region35: #{encoder_block_forward.12} parent=0 // pred_check_branch
    %88 = sbr.rel (0) target = $region37
  $region36: #{encoder_block_forward.12} parent=0 // pred_region
    _
  $region37: #{encoder_block_forward.12} parent=0 // pred_fallthru
    _

// kernel: encoder_block_forward.14
$region0: #{encoder_block_forward.14}
  #allocation0 [shape = 'u32[]', space=smem, size = 0x4, offset = 0x4, fixed_abs, tag = 'smem constant byte address 0x4 - core index']
  #allocation1 [shape = 'u32[72,128]{1,0:T(1,128)}', space=vmem, size = 0x9000, scoped, tag = 'internal scratch']
  %s0 = inlined_call_operand.vmem [shape: bf16[72,32], index: 0, kind: input, shape index: {}]
  %s1 = inlined_call_operand.vmem [shape: f32[16,72], index: 1, kind: input, shape index: {}]
  %s2 = inlined_call_operand.vmem [shape: f32[16,32], index: 2, kind: output, shape index: {0}]
  %s3 = inlined_call_operand.vmem [shape: f32[16,1], index: 3, kind: output, shape index: {1}]
  %s4 = inlined_call_operand.vmem [shape: f32[16,1], index: 4, kind: output, shape index: {2}]
  %5 = xla_tuple %s2, %s3, %s4
  %s6 = sld [smem:[#allocation0]]
  $region38: #{encoder_block_forward.14} parent=0
    _
  %s8 = ssub.s32 1, %s6
  %s9 = scalar_select 0, %s8, %s6
  // Predicated region
  $region2: #{encoder_block_forward.14} parent=0 // pred_check
    _
  $region3: #{encoder_block_forward.14} parent=0 // pred_check_branch
    %11 = sbr.rel (0) target = $region5
  $region4: #{encoder_block_forward.14} parent=0 // pred_region
    _
  $region5: #{encoder_block_forward.14} parent=0 // pred_fallthru
    _
  // Predicated region
  $region6: #{encoder_block_forward.14} parent=0 // pred_check
    _
  $region7: #{encoder_block_forward.14} parent=0 // pred_check_branch
    %13 = sbr.rel (0) target = $region9
  $region8: #{encoder_block_forward.14} parent=0 // pred_region
    _
  $region9: #{encoder_block_forward.14} parent=0 // pred_fallthru
    _
  %p14 = scmp.eq.s32.totalorder 0, 0
  // Predicated region
  $region10: #{encoder_block_forward.14} parent=0 // pred_check
    %p15 = pneg %p14
  $region11: #{encoder_block_forward.14} parent=0 // pred_check_branch
    %17 = sbr.rel (%p15) target = $region13
  $region12: #{encoder_block_forward.14} parent=0 // pred_region
    %vm18 = vcmask 7168
    %19 = vst.msk [vmem:[%s3] sm:$0xff] %vm18, 0.0
    %20 = vst.msk [vmem:[%s3 + $0x8] sm:$0xff] %vm18, 0.0
    %21 = vst.msk [vmem:[%s4] sm:$0xff] %vm18, 0.0
    %22 = vst.msk [vmem:[%s4 + $0x8] sm:$0xff] %vm18, 0.0
  $region13: #{encoder_block_forward.14} parent=0 // pred_fallthru
    _
  %v23 = vld [vmem:[%s1] sm:$0xff]
  %v24 = vld [vmem:[%s1 + $0x8] sm:$0xff]
  %v25 = vld [vmem:[%s0] sm:$0xf]
  %v26 = vld [vmem:[%s0 + $0x4] sm:$0xf]
  %v27 = vld [vmem:[%s0 + $0x8] sm:$0xf]
  %v28 = vld [vmem:[%s0 + $0xc] sm:$0xf]
  %v29 = vld [vmem:[%s0 + $0x10] sm:$0xf]
  %v30 = vld [vmem:[%s0 + $0x14] sm:$0xf]
  %v31 = vld [vmem:[%s0 + $0x18] sm:$0xf]
  %v32 = vld [vmem:[%s0 + $0x1c] sm:$0xf]
  %v33 = vld [vmem:[%s0 + $0x20] sm:$0xf]
  %v34 = vunpack.c.l.bf16 %v25
  %v35 = vunpack.c.l.bf16 %v26
  %v36 = vunpack.c.l.bf16 %v27
  %v37 = vunpack.c.l.bf16 %v28
  %v38 = vunpack.c.l.bf16 %v29
  %v39 = vunpack.c.l.bf16 %v30
  %v40 = vunpack.c.l.bf16 %v31
  %v41 = vunpack.c.l.bf16 %v32
  %v42 = vunpack.c.l.bf16 %v33
  %vm43 = vcmask 588800
  %v45 = vsel %vm43, %v23, 0
  %v48 = vsel %vm43, %v24, 0
  %50 = vmatpush.msra.mxu0 0.0
  %51 = vmatpush.msra.mxu0 0.0
  %52 = vmatpush.msra.mxu0 0.0
  %53 = vmatpush.msra.mxu0 0.0
  %54 = vmatpush.msra.mxu0 0.0
  %55 = vmatpush.msra.mxu0 0.0
  %56 = vmatpush.msra.mxu0 0.0
  %57 = vmatpush.msra.mxu0 %v42
  %58 = vmatpush.msra.mxu0 %v41
  %59 = vmatpush.msra.mxu0 %v40
  %60 = vmatpush.msra.mxu0 %v39
  %61 = vmatpush.msra.mxu0 %v38
  %62 = vmatpush.msra.mxu0 %v37
  %63 = vmatpush.msra.mxu0 %v36
  %64 = vmatpush.msra.mxu0 %v35
  %65 = vmatpush.msra.mxu0 %v34
  %66 = vmatmul.f32.gmra.mxu0 %v45
  %v67 = vpop.f32.mrf.mxu0
  %v68 = vadd.f32 0.0, %v67
  %69 = vmatmul.f32.gmra.mxu0 %v48
  %v70 = vpop.f32.mrf.mxu0
  %v71 = vadd.f32 0.0, %v70
  %72 = vdwg.mxu0
  %vm73 = vcmask 261120
  %74 = vst.msk [vmem:[%s2] sm:$0xff] %vm73, %v68
  %75 = vst.msk [vmem:[%s2 + $0x8] sm:$0xff] %vm73, %v71
  %v76 = vld [vmem:[%s3] sm:$0xff]
  %v77 = vld [vmem:[%s3 + $0x8] sm:$0xff]
  %v78 = vsel %vm73, %v68, 0.0
  %79 = vadd.xlane.f32.xlu0 %v78
  %v80 = vpop.xlane.xlu0 %79
  %v81 = vsel %vm73, %v71, 0.0
  %82 = vadd.xlane.f32.xlu0 %v81
  %v83 = vpop.xlane.xlu0 %82
  %v84 = vadd.f32 %v76, %v80
  %v85 = vadd.f32 %v77, %v83
  %vm86 = vcmask 7168
  %87 = vst.msk [vmem:[%s3] sm:$0xff] %vm86, %v84
  %88 = vst.msk [vmem:[%s3 + $0x8] sm:$0xff] %vm86, %v85
  %v89 = vld [vmem:[%s4] sm:$0xff]
  %v90 = vld [vmem:[%s4 + $0x8] sm:$0xff]
  %v91 = vmul.f32 %v68, %v68
  %v92 = vmul.f32 %v71, %v71
  %v93 = vsel %vm73, %v91, 0.0
  %94 = vadd.xlane.f32.xlu0 %v93
  %v95 = vpop.xlane.xlu0 %94
  %v96 = vsel %vm73, %v92, 0.0
  %97 = vadd.xlane.f32.xlu0 %v96
  %v98 = vpop.xlane.xlu0 %97
  %v99 = vadd.f32 %v89, %v95
  %v100 = vadd.f32 %v90, %v98
  %101 = vst.msk [vmem:[%s4] sm:$0xff] %vm86, %v99
  %102 = vst.msk [vmem:[%s4 + $0x8] sm:$0xff] %vm86, %v100
  // Predicated region
  $region14: #{encoder_block_forward.14} parent=0 // pred_check
    _
  $region15: #{encoder_block_forward.14} parent=0 // pred_check_branch
    %104 = sbr.rel (0) target = $region17
  $region16: #{encoder_block_forward.14} parent=0 // pred_region
    _
  $region17: #{encoder_block_forward.14} parent=0 // pred_fallthru
    _
  // Predicated region
  $region18: #{encoder_block_forward.14} parent=0 // pred_check
    _
  $region19: #{encoder_block_forward.14} parent=0 // pred_check_branch
    %106 = sbr.rel (0) target = $region21
  $region20: #{encoder_block_forward.14} parent=0 // pred_region
    _
  $region21: #{encoder_block_forward.14} parent=0 // pred_fallthru
    _
  // Predicated region
  $region22: #{encoder_block_forward.14} parent=0 // pred_check
    _
  $region23: #{encoder_block_forward.14} parent=0 // pred_check_branch
    %108 = sbr.rel (0) target = $region25
  $region24: #{encoder_block_forward.14} parent=0 // pred_region
    _
  $region25: #{encoder_block_forward.14} parent=0 // pred_fallthru
    _
  // Predicated region
  $region26: #{encoder_block_forward.14} parent=0 // pred_check
    _
  $region27: #{encoder_block_forward.14} parent=0 // pred_check_branch
    %110 = sbr.rel (0) target = $region29
  $region28: #{encoder_block_forward.14} parent=0 // pred_region
    _
  $region29: #{encoder_block_forward.14} parent=0 // pred_fallthru
    _
  // Predicated region
  $region30: #{encoder_block_forward.14} parent=0 // pred_check
    _
  $region31: #{encoder_block_forward.14} parent=0 // pred_check_branch
    %112 = sbr.rel (0) target = $region33
  $region32: #{encoder_block_forward.14} parent=0 // pred_region
    _
  $region33: #{encoder_block_forward.14} parent=0 // pred_fallthru
    _
  // Predicated region
  $region34: #{encoder_block_forward.14} parent=0 // pred_check
    _
  $region35: #{encoder_block_forward.14} parent=0 // pred_check_branch
    %114 = sbr.rel (0) target = $region37
  $region36: #{encoder_block_forward.14} parent=0 // pred_region
    _
  $region37: #{encoder_block_forward.14} parent=0 // pred_fallthru
    _

// kernel: encoder_block_forward.15
$region0: #{encoder_block_forward.15}
  #allocation0 [shape = 'u32[]', space=smem, size = 0x4, offset = 0x4, fixed_abs, tag = 'smem constant byte address 0x4 - core index']
  #allocation1 [shape = 'u32[72,128]{1,0:T(1,128)}', space=vmem, size = 0x9000, scoped, tag = 'internal scratch']
  %s0 = inlined_call_operand.vmem [shape: f32[16,32], index: 0, kind: input, shape index: {}]
  %s1 = inlined_call_operand.vmem [shape: f32[16,1], index: 1, kind: input, shape index: {}]
  %s2 = inlined_call_operand.vmem [shape: f32[16,1], index: 2, kind: input, shape index: {}]
  %s3 = inlined_call_operand.vmem [shape: f32[16,32], index: 3, kind: output, shape index: {}]
  %s4 = sld [smem:[#allocation0]]
  $region22: #{encoder_block_forward.15} parent=0
    _
  %s6 = ssub.s32 1, %s4
  %s7 = scalar_select 0, %s6, %s4
  // Predicated region
  $region2: #{encoder_block_forward.15} parent=0 // pred_check
    _
  $region3: #{encoder_block_forward.15} parent=0 // pred_check_branch
    %9 = sbr.rel (0) target = $region5
  $region4: #{encoder_block_forward.15} parent=0 // pred_region
    _
  $region5: #{encoder_block_forward.15} parent=0 // pred_fallthru
    _
  // Predicated region
  $region6: #{encoder_block_forward.15} parent=0 // pred_check
    _
  $region7: #{encoder_block_forward.15} parent=0 // pred_check_branch
    %11 = sbr.rel (0) target = $region9
  $region8: #{encoder_block_forward.15} parent=0 // pred_region
    _
  $region9: #{encoder_block_forward.15} parent=0 // pred_fallthru
    _
  // Predicated region
  $region10: #{encoder_block_forward.15} parent=0 // pred_check
    _
  $region11: #{encoder_block_forward.15} parent=0 // pred_check_branch
    %13 = sbr.rel (0) target = $region13
  $region12: #{encoder_block_forward.15} parent=0 // pred_region
    _
  $region13: #{encoder_block_forward.15} parent=0 // pred_fallthru
    _
  %v14 = vld [vmem:[%s0] sm:$0xff]
  %v15 = vld [vmem:[%s0 + $0x8] sm:$0xff]
  %v16 = vld [vmem:[%s1] sm:$0xff]
  %v17 = vld [vmem:[%s1 + $0x8] sm:$0xff]
  %19 = vset.pattern.permute.xlu0 0
  %20 = vperm.xlu0 %19, %v16
  %v21 = vpop.permute.xlu0 %20
  %24 = vset.pattern.permute.xlu0 0
  %25 = vperm.xlu0 %24, %v17
  %v26 = vpop.permute.xlu0 %25
  %v28 = vmul.f32 %v14, %v21
  %v29 = vmul.f32 %v15, %v26
  %v30 = vld [vmem:[%s2] sm:$0xff]
  %v31 = vld [vmem:[%s2 + $0x8] sm:$0xff]
  %33 = vset.pattern.permute.xlu0 0
  %34 = vperm.xlu0 %33, %v30
  %v35 = vpop.permute.xlu0 %34
  %38 = vset.pattern.permute.xlu0 0
  %39 = vperm.xlu0 %38, %v31
  %v40 = vpop.permute.xlu0 %39
  %v42 = vadd.f32 %v28, %v35
  %v43 = vadd.f32 %v29, %v40
  %v44 = vxor.u32 %v42, 2147483648
  %v45 = vxor.u32 %v43, 2147483648
  %v46 = vmul.f32 %v44, 1.442695
  %v47 = vpow.pop %v46
  %v48 = vmul.f32 %v45, 1.442695
  %v49 = vpow.pop %v48
  %v50 = vadd.f32 %v47, 1.0
  %v51 = vadd.f32 %v49, 1.0
  %v52 = vrcp.pop %v50
  %v53 = vmul.f32 %v50, %v52
  %v54 = vsub.f32 1.0, %v53
  %v55 = vmul.f32 %v52, %v54
  %v56 = vadd.f32 %v52, %v55
  %vm57 = vweird.f32 %v50
  %vm58 = vweird.f32 %v52
  %vm59 = vmor %vm57, %vm58
  %v60 = vsel %vm59, %v52, %v56
  %v61 = vand.u32 2147483647, %v50
  %vm62 = vcmp.eq.f32.partialorder %v61, 8.507059e+37
  %v63 = vand.u32 %v50, 2147483648
  %v64 = vor.u32 1.1754944e-38, %v63
  %v65 = vsel %vm62, %v64, %v60
  %v66 = vmul.f32 1.0, %v65
  %v67 = vrcp.pop %v51
  %v68 = vmul.f32 %v51, %v67
  %v69 = vsub.f32 1.0, %v68
  %v70 = vmul.f32 %v67, %v69
  %v71 = vadd.f32 %v67, %v70
  %vm72 = vweird.f32 %v51
  %vm73 = vweird.f32 %v67
  %vm74 = vmor %vm72, %vm73
  %v75 = vsel %vm74, %v67, %v71
  %v76 = vand.u32 2147483647, %v51
  %vm77 = vcmp.eq.f32.partialorder %v76, 8.507059e+37
  %v78 = vand.u32 %v51, 2147483648
  %v79 = vor.u32 1.1754944e-38, %v78
  %v80 = vsel %vm77, %v79, %v75
  %v81 = vmul.f32 1.0, %v80
  %v82 = vmul.f32 %v42, %v66
  %v83 = vmul.f32 %v43, %v81
  %vm84 = vcmask 261120
  %85 = vst.msk [vmem:[%s3] sm:$0xff] %vm84, %v82
  %86 = vst.msk [vmem:[%s3 + $0x8] sm:$0xff] %vm84, %v83
  // Predicated region
  $region14: #{encoder_block_forward.15} parent=0 // pred_check
    _
  $region15: #{encoder_block_forward.15} parent=0 // pred_check_branch
    %88 = sbr.rel (0) target = $region17
  $region16: #{encoder_block_forward.15} parent=0 // pred_region
    _
  $region17: #{encoder_block_forward.15} parent=0 // pred_fallthru
    _
  // Predicated region
  $region18: #{encoder_block_forward.15} parent=0 // pred_check
    _
  $region19: #{encoder_block_forward.15} parent=0 // pred_check_branch
    %90 = sbr.rel (0) target = $region21
  $region20: #{encoder_block_forward.15} parent=0 // pred_region
    _
  $region21: #{encoder_block_forward.15} parent=0 // pred_fallthru
    _

</llo_original>
